<compile_context>
chip_gen: v6e
topology: v6e:2x2x1
jax: 0.10.0
libtpu: 0.0.40
codegen_flags: <defaults>
</compile_context>

<pallas_src>
import functools

import jax
import jax.numpy as jnp
import numpy as np
from jax.experimental import pallas as pl
from jax.experimental.pallas import tpu as pltpu

# ACCon.__init__ defaults
MAX_INTERNAL = 5.0
TEMPERATURE = 1.0
BASE_TEMPERATURE = 1.0
TAU = 1e-6

_NEG_BIG = -1e30  # finite "-inf" for the online row max


def _round_up(x, m):
    return ((x + m - 1) // m) * m


def _accon_kernel(qp_ref, kp_ref, fq_ref, fkT_ref, out_ref,
                  m_ref, pe_ref, ne_ref, ps_ref, *, batch):
    qi = pl.program_id(0)
    ki = pl.program_id(1)
    tq = fq_ref.shape[0]
    tk = fkT_ref.shape[1]

    @pl.when(ki == 0)
    def _init():
        m_ref[...] = jnp.full(m_ref.shape, _NEG_BIG, m_ref.dtype)
        pe_ref[...] = jnp.zeros(pe_ref.shape, pe_ref.dtype)
        ne_ref[...] = jnp.zeros(ne_ref.shape, ne_ref.dtype)
        ps_ref[...] = jnp.zeros(ps_ref.shape, ps_ref.dtype)

    # Packed per-sample payloads (static lane/sublane slices, no tile crossing).
    labr_q = qp_ref[:, 0:1]           # [TQ, 1] rounded labels (query rows)
    cos_q = qp_ref[:, 1:2]            # [TQ, 1] cos(pi*l/MAX_INTERNAL)
    sin_q = qp_ref[:, 2:3]            # [TQ, 1] sin(pi*l/MAX_INTERNAL)
    labr_k = kp_ref[0:1, :]           # [1, TK]
    cos_k = kp_ref[1:2, :]            # [1, TK]
    sin_k = kp_ref[2:3, :]            # [1, TK]

    # phi = pi - (a_i - a_j),  a = pi*label/MAX_INTERNAL  (VPU only, no trig):
    #   cos(phi)   = -(cos a_i cos a_j + sin a_i sin a_j)
    #   |sin(phi)| = |sin a_i cos a_j - cos a_i sin a_j|
    cos_phi = -(cos_q * cos_k + sin_q * sin_k)                  # [TQ, TK]
    abs_sin_phi = jnp.abs(sin_q * cos_k - cos_q * sin_k)        # [TQ, TK]

    mask = labr_q == labr_k                                     # [TQ, TK] bool

    # Small index vectors; comparisons broadcast (no [TQ,TK] int32 temporaries).
    row_ids = qi * tq + jax.lax.broadcasted_iota(jnp.int32, (tq, 1), 0)
    col_ids = ki * tk + jax.lax.broadcasted_iota(jnp.int32, (1, tk), 1)
    col_valid = col_ids < batch                                 # (1, TK)
    off_diag = row_ids != col_ids                               # (TQ, TK) bool

    # Gram tile on the MXU: bf16 x bf16 -> f32 accumulate.
    cos_theta = jnp.dot(fq_ref[...], fkT_ref[...],
                        preferred_element_type=jnp.float32)     # [TQ, TK]
    cos_theta = jnp.clip(cos_theta, -1.0, 1.0)
    sin_theta = jnp.sqrt(1.0 - cos_theta * cos_theta + TAU)

    inv_t = 1.0 / TEMPERATURE
    logit = cos_theta * inv_t                                   # unshifted
    neg_val = (cos_theta * cos_phi - sin_theta * abs_sin_phi) * inv_t

    # Online row max.  Padded columns have zero features -> logit 0, which never
    # exceeds the diagonal (~1/T) of a valid row, so no validity mask is needed.
    m_ref[...] = jnp.maximum(m_ref[...],
                             jnp.max(logit, axis=1, keepdims=True))

    # One fused exponential: each column is either a positive (same rounded
    # label -> plain logit; the max shift is applied once at finalize) or a
    # negative (unshifted, exactly as in the reference; bounded by e^{2/T}).
    e = jnp.exp(jnp.where(mask, logit, neg_val))
    pos_sel = mask & off_diag & col_valid
    neg_sel = jnp.logical_not(mask) & col_valid
    pe_ref[...] = pe_ref[...] + jnp.sum(jnp.where(pos_sel, e, 0.0),
                                        axis=1, keepdims=True)
    ne_ref[...] = ne_ref[...] + jnp.sum(jnp.where(neg_sel, e, 0.0),
                                        axis=1, keepdims=True)

    # Positive-logit sum (diagonal included, as in the reference).
    ps_ref[...] = ps_ref[...] + jnp.sum(
        jnp.where(mask & col_valid, logit, 0.0), axis=1, keepdims=True)

    @pl.when(ki == pl.num_programs(1) - 1)
    def _finalize():
        m = m_ref[...]                                          # [TQ, 1]
        denom = jnp.exp(-m) * pe_ref[...] + ne_ref[...]         # [TQ, 1]
        mc = qp_ref[:, 3:4]          # precomputed positive counts (0 if padded)
        # sum_j mask*log_prob = sum_j mask*logit - mc*m - mc*log(denom)
        pos_row = ps_ref[...] - mc * (m + jnp.log(denom))
        row_valid = (qi * tq
                     + jax.lax.broadcasted_iota(jnp.int32, (tq, 1), 0)) < batch
        pos_row = jnp.where(row_valid, pos_row, 0.0)
        part_pos = jnp.sum(pos_row, axis=0, keepdims=True)      # (1, 1)
        lane = jax.lax.broadcasted_iota(jnp.int32, (1, 1, 128), 2)
        out_ref[...] = jnp.where(lane == 0, part_pos, 0.0)


def accon_loss(features, labels, *, tq_max=256, tk_max=512):
    """features: [B, D] (unit-norm rows), labels: [B] or [B, 1] -> scalar loss."""
    B, D = features.shape
    labels = jnp.reshape(labels, (B, 1)).astype(jnp.float32)

    # Pad only to the next multiple of 128 (at most 127 wasted rows/cols).
    b_pad = _round_up(B, 128)

    # K tile: multiple of 128 dividing b_pad; shrink for very wide features so
    # the double-buffered (D, tk) bf16 key tile stays comfortably inside VMEM
    # (v7x has only 64 MiB per TensorCore).
    tk = 128
    for cand in (512, 256, 128):
        if cand <= max(tk_max, 128) and b_pad % cand == 0:
            tk = cand
            break
    while tk > 128 and D * tk * 2 * 2 > (8 << 20):
        tk //= 2

    # Q tile: multiple of 8 dividing b_pad; keep num_q >= 2 so both v7x
    # TensorCores get query blocks (the "parallel" axis).
    tq = 8
    for cand in (256, 128, 64, 32, 16, 8):
        if cand <= max(tq_max, 8) and b_pad % cand == 0:
            tq = cand
            break
    while b_pad // tq < 2 and tq > 8:
        tq //= 2

    num_q, num_k = b_pad // tq, b_pad // tk

    # Per-sample label payload (tiny [B,*] host-side ops); the [B,B]
    # mask / cos_phi / |sin_phi| matrices are rebuilt inside the kernel.
    lab_r = jnp.round(labels, 1)                 # torch.round(..., decimals=1)
    ang = labels * (np.pi / MAX_INTERNAL)
    cos_a = jnp.cos(ang)
    sin_a = jnp.sin(ang)
    # Positive counts depend only on labels -> hoisted out of the kernel.
    mask_full = (lab_r == lab_r.T).astype(jnp.float32)          # [B, B]
    mc = jnp.sum(mask_full, axis=1, keepdims=True)              # [B, 1]
    cnt_total = jnp.sum(mc)

    q_payload = jnp.concatenate([lab_r, cos_a, sin_a, mc], axis=1)   # [B, 4]
    q_payload = jnp.pad(q_payload, ((0, b_pad - B), (0, 0)))
    k_payload = jnp.concatenate([lab_r, cos_a, sin_a], axis=1).T     # [3, B]
    k_payload = jnp.pad(k_payload, ((0, 0), (0, b_pad - B)))

    # NOTE: features go to the MXU in bf16 (reference is f32); cos_theta and the
    # row max differ by ~1e-3, loss matches the f32 reference to ~1e-2.
    f = jnp.pad(features.astype(jnp.bfloat16), ((0, b_pad - B), (0, 0)))
    f_t = f.T                                    # [D, b_pad] MXU-friendly RHS

    kernel = functools.partial(_accon_kernel, batch=B)

    partials = pl.pallas_call(
        kernel,
        out_shape=jax.ShapeDtypeStruct((num_q, 1, 128), jnp.float32),
        grid_spec=pltpu.PrefetchScalarGridSpec(
            num_scalar_prefetch=0,
            grid=(num_q, num_k),
            in_specs=[
                pl.BlockSpec((tq, 4), lambda qi, ki: (qi, 0)),   # row payload
                pl.BlockSpec((3, tk), lambda qi, ki: (0, ki)),   # col payload
                pl.BlockSpec((tq, D), lambda qi, ki: (qi, 0)),   # features rows
                pl.BlockSpec((D, tk), lambda qi, ki: (0, ki)),   # features^T cols
            ],
            out_specs=pl.BlockSpec((1, 1, 128), lambda qi, ki: (qi, 0, 0)),
            scratch_shapes=[pltpu.VMEM((tq, 1), jnp.float32)] * 4,
        ),
        compiler_params=pltpu.CompilerParams(
            dimension_semantics=("parallel", "arbitrary"),
            vmem_limit_bytes=48 << 20),
    )(q_payload, k_payload, f, f_t)

    pos_total = jnp.sum(partials[:, 0, 0])
    mean_log_prob_pos = (pos_total + TAU) / (cnt_total + TAU)
    loss = -(TEMPERATURE / BASE_TEMPERATURE) * mean_log_prob_pos
    # TODO(synk): PyTorch's host-side `loss.item()` INF sanity check / raise is
    # not representable inside the kernel; omitted.
    return loss


def _accon_reference(features, labels):
    """Pure-JAX mirror of the PyTorch ACCon.forward (f32, for verification)."""
    B = features.shape[0]
    labels = jnp.reshape(labels, (B, 1)).astype(jnp.float32)
    feats = features.astype(jnp.float32)
    dist = labels - labels.T
    lab_r = jnp.round(labels, 1)
    mask = (lab_r == lab_r.T).astype(jnp.float32)
    phi = (1.0 - dist / MAX_INTERNAL) * np.pi
    cos_phi = jnp.cos(phi)
    sin_phi = jnp.sin(phi)
    cos_theta = jnp.clip(feats @ feats.T, -1.0, 1.0)
    sin_theta = jnp.sqrt(1.0 - cos_theta ** 2 + TAU)
    logits = cos_theta / TEMPERATURE
    logits = logits - jnp.max(logits, axis=1, keepdims=True)
    logits_mask = 1.0 - jnp.eye(B, dtype=jnp.float32)
    neg_logit = (cos_theta * cos_phi - sin_theta * jnp.abs(sin_phi)) / TEMPERATURE
    neg_logit = jnp.where(mask == 1.0, logits, neg_logit)
    exp_logits = jnp.exp(neg_logit) * logits_mask
    log_prob = logits - jnp.log(jnp.sum(exp_logits, axis=1, keepdims=True))
    mean_log_prob_pos = (jnp.sum(mask * log_prob) + TAU) / (jnp.sum(mask) + TAU)
    return -(TEMPERATURE / BASE_TEMPERATURE) * mean_log_prob_pos


if __name__ == "__main__":
    key = jax.random.PRNGKey(0)
    B, D = 8, 32
    kf, kl = jax.random.split(key)
    feats = jax.random.normal(kf, (B, D), dtype=jnp.float32)
    feats = feats / jnp.linalg.norm(feats, axis=1, keepdims=True)  # unit-norm rows
    labels = jax.random.uniform(kl, (B, 1), dtype=jnp.float32, minval=0.0, maxval=5.0)

    loss = accon_loss(feats, labels)
    jax.block_until_ready(loss)

    ref = _accon_reference(feats, labels)
    np.testing.assert_allclose(np.asarray(loss), np.asarray(ref), rtol=5e-2, atol=5e-2)
    print("KERNEL_OK")
</pallas_src>

<mosaic_0001>
module attributes {stable_mosaic.version = 11 : i64} {
  func.func @_accon_kernel(%arg0: i32, %arg1: i32, %arg2: memref<64x4xf32, #tpu.memory_space<vmem>>, %arg3: memref<3x128xf32, #tpu.memory_space<vmem>>, %arg4: memref<64x32xbf16, #tpu.memory_space<vmem>>, %arg5: memref<32x128xbf16, #tpu.memory_space<vmem>>, %arg6: memref<1x1x128xf32, #tpu.memory_space<vmem>>, %arg7: memref<64x1xf32, #tpu.memory_space<vmem>>, %arg8: memref<64x1xf32, #tpu.memory_space<vmem>>, %arg9: memref<64x1xf32, #tpu.memory_space<vmem>>, %arg10: memref<64x1xf32, #tpu.memory_space<vmem>>) attributes {dimension_semantics = [#tpu.dimension_semantics<parallel>, #tpu.dimension_semantics<arbitrary>], iteration_bounds = array<i64: 2, 1>, scalar_prefetch = 0 : i64, scratch_operands = 4 : i64, tpu.core_type = #tpu.core_type<tc>, window_params = [{transform_indices = @transform_0, window_bounds = array<i64: 64, 4>}, {transform_indices = @transform_1, window_bounds = array<i64: 3, 128>}, {transform_indices = @transform_2, window_bounds = array<i64: 64, 32>}, {transform_indices = @transform_3, window_bounds = array<i64: 32, 128>}, {transform_indices = @transform_4, window_bounds = array<i64: 1, 1, 128>}]} {
    %c0_i32 = arith.constant 0 : i32
    %0 = arith.cmpi eq, %arg1, %c0_i32 : i32
    %1 = arith.extui %0 : i1 to i32
    %c0_i32_0 = arith.constant 0 : i32
    %2 = arith.cmpi ne, %1, %c0_i32_0 : i32
    scf.if %2 {
      %cst_47 = arith.constant -1.000000e+30 : f32
      %101 = vector.broadcast %cst_47 : f32 to vector<64x1xf32>
      %c0_48 = arith.constant 0 : index
      %c0_49 = arith.constant 0 : index
      %102 = vector.load %arg7[%c0_48, %c0_49] : memref<64x1xf32, #tpu.memory_space<vmem>>, vector<64x1xf32>
      tpu.vector_store %arg7[%c0_48, %c0_49], %101 {strides = array<i32>} : memref<64x1xf32, #tpu.memory_space<vmem>>, vector<64x1xf32>,
      %cst_50 = arith.constant 0.000000e+00 : f32
      %103 = vector.broadcast %cst_50 : f32 to vector<64x1xf32>
      %c0_51 = arith.constant 0 : index
      %c0_52 = arith.constant 0 : index
      %104 = vector.load %arg8[%c0_51, %c0_52] : memref<64x1xf32, #tpu.memory_space<vmem>>, vector<64x1xf32>
      tpu.vector_store %arg8[%c0_51, %c0_52], %103 {strides = array<i32>} : memref<64x1xf32, #tpu.memory_space<vmem>>, vector<64x1xf32>,
      %cst_53 = arith.constant 0.000000e+00 : f32
      %105 = vector.broadcast %cst_53 : f32 to vector<64x1xf32>
      %c0_54 = arith.constant 0 : index
      %c0_55 = arith.constant 0 : index
      %106 = vector.load %arg9[%c0_54, %c0_55] : memref<64x1xf32, #tpu.memory_space<vmem>>, vector<64x1xf32>
      tpu.vector_store %arg9[%c0_54, %c0_55], %105 {strides = array<i32>} : memref<64x1xf32, #tpu.memory_space<vmem>>, vector<64x1xf32>,
      %cst_56 = arith.constant 0.000000e+00 : f32
      %107 = vector.broadcast %cst_56 : f32 to vector<64x1xf32>
      %c0_57 = arith.constant 0 : index
      %c0_58 = arith.constant 0 : index
      %108 = vector.load %arg10[%c0_57, %c0_58] : memref<64x1xf32, #tpu.memory_space<vmem>>, vector<64x1xf32>
      tpu.vector_store %arg10[%c0_57, %c0_58], %107 {strides = array<i32>} : memref<64x1xf32, #tpu.memory_space<vmem>>, vector<64x1xf32>,
    } else {
    }
    %c0 = arith.constant 0 : index
    %c0_1 = arith.constant 0 : index
    %3 = vector.load %arg2[%c0, %c0_1] : memref<64x4xf32, #tpu.memory_space<vmem>>, vector<64x1xf32>
    %c0_2 = arith.constant 0 : index
    %c1 = arith.constant 1 : index
    %4 = vector.load %arg2[%c0_2, %c1] : memref<64x4xf32, #tpu.memory_space<vmem>>, vector<64x1xf32>
    %c0_3 = arith.constant 0 : index
    %c2 = arith.constant 2 : index
    %5 = vector.load %arg2[%c0_3, %c2] : memref<64x4xf32, #tpu.memory_space<vmem>>, vector<64x1xf32>
    %c0_4 = arith.constant 0 : index
    %c0_5 = arith.constant 0 : index
    %6 = vector.load %arg3[%c0_4, %c0_5] : memref<3x128xf32, #tpu.memory_space<vmem>>, vector<1x128xf32>
    %c1_6 = arith.constant 1 : index
    %c0_7 = arith.constant 0 : index
    %7 = vector.load %arg3[%c1_6, %c0_7] : memref<3x128xf32, #tpu.memory_space<vmem>>, vector<1x128xf32>
    %c2_8 = arith.constant 2 : index
    %c0_9 = arith.constant 0 : index
    %8 = vector.load %arg3[%c2_8, %c0_9] : memref<3x128xf32, #tpu.memory_space<vmem>>, vector<1x128xf32>
    %9 = vector.broadcast %4 : vector<64x1xf32> to vector<64x128xf32>
    %10 = vector.broadcast %7 : vector<1x128xf32> to vector<64x128xf32>
    %11 = arith.mulf %9, %10 : vector<64x128xf32>
    %12 = vector.broadcast %5 : vector<64x1xf32> to vector<64x128xf32>
    %13 = vector.broadcast %8 : vector<1x128xf32> to vector<64x128xf32>
    %14 = arith.mulf %12, %13 : vector<64x128xf32>
    %15 = arith.addf %11, %14 : vector<64x128xf32>
    %cst = arith.constant 0.000000e+00 : f32
    %16 = vector.broadcast %cst : f32 to vector<64x128xf32>
    %17 = arith.subf %16, %15 : vector<64x128xf32>
    %18 = vector.broadcast %5 : vector<64x1xf32> to vector<64x128xf32>
    %19 = vector.broadcast %7 : vector<1x128xf32> to vector<64x128xf32>
    %20 = arith.mulf %18, %19 : vector<64x128xf32>
    %21 = vector.broadcast %4 : vector<64x1xf32> to vector<64x128xf32>
    %22 = vector.broadcast %8 : vector<1x128xf32> to vector<64x128xf32>
    %23 = arith.mulf %21, %22 : vector<64x128xf32>
    %24 = arith.subf %20, %23 : vector<64x128xf32>
    %25 = math.absf %24 : vector<64x128xf32>
    %26 = vector.broadcast %3 : vector<64x1xf32> to vector<64x128xf32>
    %27 = vector.broadcast %6 : vector<1x128xf32> to vector<64x128xf32>
    %28 = arith.cmpf oeq, %26, %27 : vector<64x128xf32>
    %c64_i32 = arith.constant 64 : i32
    %29 = arith.muli %arg0, %c64_i32 : i32
    %30 = tpu.iota {dimensions = array<i32: 0>} : vector<64x1xi32>
    %31 = vector.broadcast %29 : i32 to vector<64x1xi32>
    %32 = arith.addi %31, %30 : vector<64x1xi32>
    %c128_i32 = arith.constant 128 : i32
    %33 = arith.muli %arg1, %c128_i32 : i32
    %34 = tpu.iota {dimensions = array<i32: 1>} : vector<1x128xi32>
    %35 = vector.broadcast %33 : i32 to vector<1x128xi32>
    %36 = arith.addi %35, %34 : vector<1x128xi32>
    %c8_i32 = arith.constant 8 : i32
    %37 = vector.broadcast %c8_i32 : i32 to vector<1x128xi32>
    %38 = arith.cmpi slt, %36, %37 : vector<1x128xi32>
    %39 = vector.broadcast %32 : vector<64x1xi32> to vector<64x128xi32>
    %40 = vector.broadcast %36 : vector<1x128xi32> to vector<64x128xi32>
    %41 = arith.cmpi ne, %39, %40 : vector<64x128xi32>
    %c0_10 = arith.constant 0 : index
    %c0_11 = arith.constant 0 : index
    %42 = vector.load %arg4[%c0_10, %c0_11] : memref<64x32xbf16, #tpu.memory_space<vmem>>, vector<64x32xbf16>
    %c0_12 = arith.constant 0 : index
    %c0_13 = arith.constant 0 : index
    %43 = vector.load %arg5[%c0_12, %c0_13] : memref<32x128xbf16, #tpu.memory_space<vmem>>, vector<32x128xbf16>
    %cst_14 = arith.constant dense<0.000000e+00> : vector<64x128xf32>
    %44 = tpu.matmul %42, %43, %cst_14 {dimension_numbers = #tpu.dot_dimension_numbers<[1], [0], [0], [1], [0, 0, 1, 1], [], []>} : vector<64x32xbf16>, vector<32x128xbf16>, vector<64x128xf32> -> vector<64x128xf32>
    %cst_15 = arith.constant -1.000000e+00 : f32
    %cst_16 = arith.constant 1.000000e+00 : f32
    %45 = vector.broadcast %cst_15 : f32 to vector<64x128xf32>
    %46 = arith.maximumf %45, %44 : vector<64x128xf32>
    %47 = vector.broadcast %cst_16 : f32 to vector<64x128xf32>
    %48 = arith.minimumf %47, %46 : vector<64x128xf32>
    %49 = arith.mulf %48, %48 : vector<64x128xf32>
    %cst_17 = arith.constant 1.000000e+00 : f32
    %50 = vector.broadcast %cst_17 : f32 to vector<64x128xf32>
    %51 = arith.subf %50, %49 : vector<64x128xf32>
    %cst_18 = arith.constant 9.99999997E-7 : f32
    %52 = vector.broadcast %cst_18 : f32 to vector<64x128xf32>
    %53 = arith.addf %51, %52 : vector<64x128xf32>
    %54 = math.sqrt %53 : vector<64x128xf32>
    %cst_19 = arith.constant 1.000000e+00 : f32
    %55 = vector.broadcast %cst_19 : f32 to vector<64x128xf32>
    %56 = arith.mulf %48, %55 : vector<64x128xf32>
    %57 = arith.mulf %48, %17 : vector<64x128xf32>
    %58 = arith.mulf %54, %25 : vector<64x128xf32>
    %59 = arith.subf %57, %58 : vector<64x128xf32>
    %cst_20 = arith.constant 1.000000e+00 : f32
    %60 = vector.broadcast %cst_20 : f32 to vector<64x128xf32>
    %61 = arith.mulf %59, %60 : vector<64x128xf32>
    %c0_21 = arith.constant 0 : index
    %c0_22 = arith.constant 0 : index
    %62 = vector.load %arg7[%c0_21, %c0_22] : memref<64x1xf32, #tpu.memory_space<vmem>>, vector<64x1xf32>
    %cst_23 = arith.constant dense<0xFF800000> : vector<64xf32>
    %63 = vector.multi_reduction <maximumf>, %56, %cst_23 [1] : vector<64x128xf32> to vector<64xf32>
    %64 = vector.shape_cast %63 : vector<64xf32> to vector<64x1xf32>
    %65 = arith.maximumf %62, %64 : vector<64x1xf32>
    %c0_24 = arith.constant 0 : index
    %c0_25 = arith.constant 0 : index
    %66 = vector.load %arg7[%c0_24, %c0_25] : memref<64x1xf32, #tpu.memory_space<vmem>>, vector<64x1xf32>
    tpu.vector_store %arg7[%c0_24, %c0_25], %65 {strides = array<i32>} : memref<64x1xf32, #tpu.memory_space<vmem>>, vector<64x1xf32>,
    %67 = arith.select %28, %56, %61 : vector<64x128xi1>, vector<64x128xf32>
    %68 = math.exp %67 : vector<64x128xf32>
    %69 = arith.andi %28, %41 : vector<64x128xi1>
    %70 = vector.broadcast %38 : vector<1x128xi1> to vector<64x128xi1>
    %71 = arith.andi %69, %70 : vector<64x128xi1>
    %cst_26 = arith.constant dense<true> : vector<64x128xi1>
    %72 = arith.xori %28, %cst_26 : vector<64x128xi1>
    %73 = vector.broadcast %38 : vector<1x128xi1> to vector<64x128xi1>
    %74 = arith.andi %72, %73 : vector<64x128xi1>
    %c0_27 = arith.constant 0 : index
    %c0_28 = arith.constant 0 : index
    %75 = vector.load %arg8[%c0_27, %c0_28] : memref<64x1xf32, #tpu.memory_space<vmem>>, vector<64x1xf32>
    %cst_29 = arith.constant 0.000000e+00 : f32
    %76 = vector.broadcast %cst_29 : f32 to vector<64x128xf32>
    %77 = arith.select %71, %68, %76 : vector<64x128xi1>, vector<64x128xf32>
    %cst_30 = arith.constant dense<0.000000e+00> : vector<64xf32>
    %78 = vector.multi_reduction <add>, %77, %cst_30 [1] : vector<64x128xf32> to vector<64xf32>
    %79 = vector.shape_cast %78 : vector<64xf32> to vector<64x1xf32>
    %80 = arith.addf %75, %79 : vector<64x1xf32>
    %c0_31 = arith.constant 0 : index
    %c0_32 = arith.constant 0 : index
    %81 = vector.load %arg8[%c0_31, %c0_32] : memref<64x1xf32, #tpu.memory_space<vmem>>, vector<64x1xf32>
    tpu.vector_store %arg8[%c0_31, %c0_32], %80 {strides = array<i32>} : memref<64x1xf32, #tpu.memory_space<vmem>>, vector<64x1xf32>,
    %c0_33 = arith.constant 0 : index
    %c0_34 = arith.constant 0 : index
    %82 = vector.load %arg9[%c0_33, %c0_34] : memref<64x1xf32, #tpu.memory_space<vmem>>, vector<64x1xf32>
    %cst_35 = arith.constant 0.000000e+00 : f32
    %83 = vector.broadcast %cst_35 : f32 to vector<64x128xf32>
    %84 = arith.select %74, %68, %83 : vector<64x128xi1>, vector<64x128xf32>
    %cst_36 = arith.constant dense<0.000000e+00> : vector<64xf32>
    %85 = vector.multi_reduction <add>, %84, %cst_36 [1] : vector<64x128xf32> to vector<64xf32>
    %86 = vector.shape_cast %85 : vector<64xf32> to vector<64x1xf32>
    %87 = arith.addf %82, %86 : vector<64x1xf32>
    %c0_37 = arith.constant 0 : index
    %c0_38 = arith.constant 0 : index
    %88 = vector.load %arg9[%c0_37, %c0_38] : memref<64x1xf32, #tpu.memory_space<vmem>>, vector<64x1xf32>
    tpu.vector_store %arg9[%c0_37, %c0_38], %87 {strides = array<i32>} : memref<64x1xf32, #tpu.memory_space<vmem>>, vector<64x1xf32>,
    %c0_39 = arith.constant 0 : index
    %c0_40 = arith.constant 0 : index
    %89 = vector.load %arg10[%c0_39, %c0_40] : memref<64x1xf32, #tpu.memory_space<vmem>>, vector<64x1xf32>
    %90 = vector.broadcast %38 : vector<1x128xi1> to vector<64x128xi1>
    %91 = arith.andi %28, %90 : vector<64x128xi1>
    %cst_41 = arith.constant 0.000000e+00 : f32
    %92 = vector.broadcast %cst_41 : f32 to vector<64x128xf32>
    %93 = arith.select %91, %56, %92 : vector<64x128xi1>, vector<64x128xf32>
    %cst_42 = arith.constant dense<0.000000e+00> : vector<64xf32>
    %94 = vector.multi_reduction <add>, %93, %cst_42 [1] : vector<64x128xf32> to vector<64xf32>
    %95 = vector.shape_cast %94 : vector<64xf32> to vector<64x1xf32>
    %96 = arith.addf %89, %95 : vector<64x1xf32>
    %c0_43 = arith.constant 0 : index
    %c0_44 = arith.constant 0 : index
    %97 = vector.load %arg10[%c0_43, %c0_44] : memref<64x1xf32, #tpu.memory_space<vmem>>, vector<64x1xf32>
    tpu.vector_store %arg10[%c0_43, %c0_44], %96 {strides = array<i32>} : memref<64x1xf32, #tpu.memory_space<vmem>>, vector<64x1xf32>,
    %c0_i32_45 = arith.constant 0 : i32
    %98 = arith.cmpi eq, %arg1, %c0_i32_45 : i32
    %99 = arith.extui %98 : i1 to i32
    %c0_i32_46 = arith.constant 0 : i32
    %100 = arith.cmpi ne, %99, %c0_i32_46 : i32
    scf.if %100 {
      %c0_47 = arith.constant 0 : index
      %c0_48 = arith.constant 0 : index
      %101 = vector.load %arg7[%c0_47, %c0_48] : memref<64x1xf32, #tpu.memory_space<vmem>>, vector<64x1xf32>
      %cst_49 = arith.constant 0.000000e+00 : f32
      %102 = vector.broadcast %cst_49 : f32 to vector<64x1xf32>
      %103 = arith.subf %102, %101 : vector<64x1xf32>
      %104 = math.exp %103 : vector<64x1xf32>
      %c0_50 = arith.constant 0 : index
      %c0_51 = arith.constant 0 : index
      %105 = vector.load %arg8[%c0_50, %c0_51] : memref<64x1xf32, #tpu.memory_space<vmem>>, vector<64x1xf32>
      %106 = arith.mulf %104, %105 : vector<64x1xf32>
      %c0_52 = arith.constant 0 : index
      %c0_53 = arith.constant 0 : index
      %107 = vector.load %arg9[%c0_52, %c0_53] : memref<64x1xf32, #tpu.memory_space<vmem>>, vector<64x1xf32>
      %108 = arith.addf %106, %107 : vector<64x1xf32>
      %c0_54 = arith.constant 0 : index
      %c3 = arith.constant 3 : index
      %109 = vector.load %arg2[%c0_54, %c3] : memref<64x4xf32, #tpu.memory_space<vmem>>, vector<64x1xf32>
      %c0_55 = arith.constant 0 : index
      %c0_56 = arith.constant 0 : index
      %110 = vector.load %arg10[%c0_55, %c0_56] : memref<64x1xf32, #tpu.memory_space<vmem>>, vector<64x1xf32>
      %111 = math.log %108 : vector<64x1xf32>
      %112 = arith.addf %101, %111 : vector<64x1xf32>
      %113 = arith.mulf %109, %112 : vector<64x1xf32>
      %114 = arith.subf %110, %113 : vector<64x1xf32>
      %c64_i32_57 = arith.constant 64 : i32
      %115 = arith.muli %arg0, %c64_i32_57 : i32
      %116 = tpu.iota {dimensions = array<i32: 0>} : vector<64x1xi32>
      %117 = vector.broadcast %115 : i32 to vector<64x1xi32>
      %118 = arith.addi %117, %116 : vector<64x1xi32>
      %c8_i32_58 = arith.constant 8 : i32
      %119 = vector.broadcast %c8_i32_58 : i32 to vector<64x1xi32>
      %120 = arith.cmpi slt, %118, %119 : vector<64x1xi32>
      %cst_59 = arith.constant 0.000000e+00 : f32
      %121 = vector.broadcast %cst_59 : f32 to vector<64x1xf32>
      %122 = arith.select %120, %114, %121 : vector<64x1xi1>, vector<64x1xf32>
      %cst_60 = arith.constant dense<0.000000e+00> : vector<1xf32>
      %123 = vector.multi_reduction <add>, %122, %cst_60 [0] : vector<64x1xf32> to vector<1xf32>
      %124 = vector.shape_cast %123 : vector<1xf32> to vector<1x1xf32>
      %125 = tpu.iota {dimensions = array<i32: 2>} : vector<1x1x128xi32>
      %c0_i32_61 = arith.constant 0 : i32
      %126 = vector.broadcast %c0_i32_61 : i32 to vector<1x1x128xi32>
      %127 = arith.cmpi eq, %125, %126 : vector<1x1x128xi32>
      %cst_62 = arith.constant 0.000000e+00 : f32
      %128 = vector.shape_cast %124 : vector<1x1xf32> to vector<1x1x1xf32>
      %129 = vector.broadcast %128 : vector<1x1x1xf32> to vector<1x1x128xf32>
      %130 = vector.broadcast %cst_62 : f32 to vector<1x1x128xf32>
      %131 = arith.select %127, %129, %130 : vector<1x1x128xi1>, vector<1x1x128xf32>
      %c0_63 = arith.constant 0 : index
      %c0_64 = arith.constant 0 : index
      %c0_65 = arith.constant 0 : index
      %132 = vector.load %arg6[%c0_63, %c0_64, %c0_65] : memref<1x1x128xf32, #tpu.memory_space<vmem>>, vector<1x1x128xf32>
      tpu.vector_store %arg6[%c0_63, %c0_64, %c0_65], %131 {strides = array<i32>} : memref<1x1x128xf32, #tpu.memory_space<vmem>>, vector<1x1x128xf32>,
    } else {
    }
    return
  }
  func.func @transform_0(%arg0: i32, %arg1: i32) -> (i32, i32) {
    %c0_i32 = arith.constant 0 : i32
    %c0_i32_0 = arith.constant 0 : i32
    return %arg0, %c0_i32 : i32, i32
  }
  func.func @transform_1(%arg0: i32, %arg1: i32) -> (i32, i32) {
    %c0_i32 = arith.constant 0 : i32
    %c0_i32_0 = arith.constant 0 : i32
    return %c0_i32, %arg1 : i32, i32
  }
  func.func @transform_2(%arg0: i32, %arg1: i32) -> (i32, i32) {
    %c0_i32 = arith.constant 0 : i32
    %c0_i32_0 = arith.constant 0 : i32
    return %arg0, %c0_i32 : i32, i32
  }
  func.func @transform_3(%arg0: i32, %arg1: i32) -> (i32, i32) {
    %c0_i32 = arith.constant 0 : i32
    %c0_i32_0 = arith.constant 0 : i32
    return %c0_i32, %arg1 : i32, i32
  }
  func.func @transform_4(%arg0: i32, %arg1: i32) -> (i32, i32, i32) {
    %c0_i32 = arith.constant 0 : i32
    %c0_i32_0 = arith.constant 0 : i32
    %c0_i32_1 = arith.constant 0 : i32
    return %arg0, %c0_i32, %c0_i32_0 : i32, i32, i32
  }
}

</mosaic_0001>

<llo_original>
// kernel: tpu_custom_call.1
$region0: #{tpu_custom_call.1}
  #allocation0 [shape = 'u32[]', space=smem, size = 0x4, offset = 0x4, fixed_abs, tag = 'smem constant byte address 0x4 - core index']
  #allocation1 [shape = 'u32[144,128]{1,0:T(1,128)}', space=vmem, size = 0x12000, scoped, tag = 'internal scratch']
  #allocation2 [shape = 'f32[64,1]{1,0:T(8,128)}', space=vmem, size = 0x8000, scoped, tag = 'scratch operand']
  #allocation3 [shape = 'f32[64,1]{1,0:T(8,128)}', space=vmem, size = 0x8000, scoped, tag = 'scratch operand']
  #allocation4 [shape = 'f32[64,1]{1,0:T(8,128)}', space=vmem, size = 0x8000, scoped, tag = 'scratch operand']
  #allocation5 [shape = 'f32[64,1]{1,0:T(8,128)}', space=vmem, size = 0x8000, scoped, tag = 'scratch operand']
  %s0 = inlined_call_operand.vmem [shape: f32[128,4], index: 0, kind: input, shape index: {}]
  %s1 = inlined_call_operand.vmem [shape: f32[3,128], index: 1, kind: input, shape index: {}]
  %s2 = inlined_call_operand.vmem [shape: bf16[128,32], index: 2, kind: input, shape index: {}]
  %s3 = inlined_call_operand.vmem [shape: bf16[32,128], index: 3, kind: input, shape index: {}]
  %s4 = inlined_call_operand.hbm [shape: f32[2,1,128], index: 4, kind: output, shape index: {}]
  %s5 = sld [smem:[#allocation0]]
  $region57: #{tpu_custom_call.1} parent=0
    _
  %s7 = ssub.s32 1, %s5
  %s8 = scalar_select 0, %s7, %s5
  $region1: #{tpu_custom_call.1} parent=0
    #allocation6 [shape = 'u8[1024]{0}', space=vmem, size = 0x400, scoped, tag = 'output window, operand 0']
    #allocation7 [shape = 's32[2]{0}', space=sflag, size = 0x8, scoped, tag = 'scoped memory for tpu_custom_call.1']
    %9 = vsyncpa [#allocation7], 0
    %s10 = scalar_lea.sflag [#allocation7], 1
    %11 = vsyncpa %s10, 0
    loop: start=0, step=1, limit=4
    $region2: #{tpu_custom_call.1} parent=1 // loop_pre_header
      _
    $region3: #{tpu_custom_call.1} parent=1 // loop_header
      %s13 = sphi 0, %s17
      %p14 = scmp.ge.s32.totalorder %s13, 4
      %s20 = sphi 0, %s32
      %s21 = sphi 0, %s28
      %s22 = sphi 0, %s20
      %s23 = sphi 0, %s21
      %s24 = sphi 0, %s22
      %s25 = sphi 0, %s23
      %s35 = sphi 0, %s37
      %s38 = sphi 0, %s35
      %s39 = sphi 0, %s38
      %s55 = sphi 0, %s39
      %s61 = sphi 0, %s63
      %s64 = sphi 0, %s61
      %s65 = sphi 0, %s64
      %s81 = sphi 0, %s65
      %s87 = sphi 0, %s89
      %s90 = sphi 0, %s87
      %s91 = sphi 0, %s90
      %s107 = sphi 0, %s91
      %s113 = sphi 0, %s115
      %s116 = sphi 0, %s113
      %s117 = sphi 0, %s116
      %s133 = sphi 0, %s117
      %s139 = sphi 0, %s141
      %s142 = sphi 0, %s139
      %s143 = sphi 0, %s142
      %s159 = sphi 0, %s143
    $region4: #{tpu_custom_call.1} parent=1 // loop_header_branch
      %16 = sbr.rel (%p14) target = $region8
    $region5: #{tpu_custom_call.1} parent=1 // loop_body
      %s18 = ssub.s32 %s13, 1
      %s19 = ssub.s32 %s13, 2
      %s26 = sadd.s32 1, %s21
      %p27 = scmp.ge.s32.totalorder %s26, 1
      %s28 = scalar_select %p27, 0, %s26
      %s29 = sadd.s32 1, %s20
      %s30 = scalar_select %p27, %s29, %s20
      %p31 = scmp.ge.s32.totalorder %s30, 2
      %s32 = scalar_select %p31, 0, %s30
      %s33 = ssub.s32 %s20, %s32
      %p34 = scmp.eq.s32.totalorder %s33, 0
      %s36 = sadd.s32 %s35, 1
      %s37 = scalar_select %p34, %s35, %s36
      %p40 = pneg %p34
      %p41 = scmp.eq.s32.totalorder %s13, 1
      %p42 = por %p40, %p41
      %p43 = scmp.ne.s32.totalorder %s35, %s38
      %p44 = scmp.eq.s32.totalorder %s13, 0
      %p45 = por %p43, %p44
      %p46 = scmp.ne.s32.totalorder %s35, %s38
      %p47 = scmp.eq.s32.totalorder %s18, 1
      %p48 = por %p46, %p47
      %p49 = scmp.ne.s32.totalorder %s38, %s39
      %p50 = scmp.eq.s32.totalorder %s18, 0
      %p51 = por %p49, %p50
      %p52 = scmp.ne.s32.totalorder %s38, %s39
      %p53 = scmp.eq.s32.totalorder %s19, 1
      %p54 = por %p52, %p53
      %p56 = scmp.ne.s32.totalorder %s39, %s55
      %p57 = scmp.eq.s32.totalorder %s19, 0
      %p58 = por %p56, %p57
      %s59 = ssub.s32 %s21, %s28
      %p60 = scmp.eq.s32.totalorder %s59, 0
      %s62 = sadd.s32 %s61, 1
      %s63 = scalar_select %p60, %s61, %s62
      %p66 = pneg %p60
      %p67 = scmp.eq.s32.totalorder %s13, 1
      %p68 = por %p66, %p67
      %p69 = scmp.ne.s32.totalorder %s61, %s64
      %p70 = scmp.eq.s32.totalorder %s13, 0
      %p71 = por %p69, %p70
      %p72 = scmp.ne.s32.totalorder %s61, %s64
      %p73 = scmp.eq.s32.totalorder %s18, 1
      %p74 = por %p72, %p73
      %p75 = scmp.ne.s32.totalorder %s64, %s65
      %p76 = scmp.eq.s32.totalorder %s18, 0
      %p77 = por %p75, %p76
      %p78 = scmp.ne.s32.totalorder %s64, %s65
      %p79 = scmp.eq.s32.totalorder %s19, 1
      %p80 = por %p78, %p79
      %p82 = scmp.ne.s32.totalorder %s65, %s81
      %p83 = scmp.eq.s32.totalorder %s19, 0
      %p84 = por %p82, %p83
      %s85 = ssub.s32 %s20, %s32
      %p86 = scmp.eq.s32.totalorder %s85, 0
      %s88 = sadd.s32 %s87, 1
      %s89 = scalar_select %p86, %s87, %s88
      %p92 = pneg %p86
      %p93 = scmp.eq.s32.totalorder %s13, 1
      %p94 = por %p92, %p93
      %p95 = scmp.ne.s32.totalorder %s87, %s90
      %p96 = scmp.eq.s32.totalorder %s13, 0
      %p97 = por %p95, %p96
      %p98 = scmp.ne.s32.totalorder %s87, %s90
      %p99 = scmp.eq.s32.totalorder %s18, 1
      %p100 = por %p98, %p99
      %p101 = scmp.ne.s32.totalorder %s90, %s91
      %p102 = scmp.eq.s32.totalorder %s18, 0
      %p103 = por %p101, %p102
      %p104 = scmp.ne.s32.totalorder %s90, %s91
      %p105 = scmp.eq.s32.totalorder %s19, 1
      %p106 = por %p104, %p105
      %p108 = scmp.ne.s32.totalorder %s91, %s107
      %p109 = scmp.eq.s32.totalorder %s19, 0
      %p110 = por %p108, %p109
      %s111 = ssub.s32 %s21, %s28
      %p112 = scmp.eq.s32.totalorder %s111, 0
      %s114 = sadd.s32 %s113, 1
      %s115 = scalar_select %p112, %s113, %s114
      %p118 = pneg %p112
      %p119 = scmp.eq.s32.totalorder %s13, 1
      %p120 = por %p118, %p119
      %p121 = scmp.ne.s32.totalorder %s113, %s116
      %p122 = scmp.eq.s32.totalorder %s13, 0
      %p123 = por %p121, %p122
      %p124 = scmp.ne.s32.totalorder %s113, %s116
      %p125 = scmp.eq.s32.totalorder %s18, 1
      %p126 = por %p124, %p125
      %p127 = scmp.ne.s32.totalorder %s116, %s117
      %p128 = scmp.eq.s32.totalorder %s18, 0
      %p129 = por %p127, %p128
      %p130 = scmp.ne.s32.totalorder %s116, %s117
      %p131 = scmp.eq.s32.totalorder %s19, 1
      %p132 = por %p130, %p131
      %p134 = scmp.ne.s32.totalorder %s117, %s133
      %p135 = scmp.eq.s32.totalorder %s19, 0
      %p136 = por %p134, %p135
      %s137 = ssub.s32 %s20, %s32
      %p138 = scmp.eq.s32.totalorder %s137, 0
      %s140 = sadd.s32 %s139, 1
      %s141 = scalar_select %p138, %s139, %s140
      %p144 = pneg %p138
      %p145 = scmp.eq.s32.totalorder %s13, 1
      %p146 = por %p144, %p145
      %p147 = scmp.ne.s32.totalorder %s139, %s142
      %p148 = scmp.eq.s32.totalorder %s13, 0
      %p149 = por %p147, %p148
      %p150 = scmp.ne.s32.totalorder %s139, %s142
      %p151 = scmp.eq.s32.totalorder %s18, 1
      %p152 = por %p150, %p151
      %p153 = scmp.ne.s32.totalorder %s142, %s143
      %p154 = scmp.eq.s32.totalorder %s18, 0
      %p155 = por %p153, %p154
      %p156 = scmp.ne.s32.totalorder %s142, %s143
      %p157 = scmp.eq.s32.totalorder %s19, 1
      %p158 = por %p156, %p157
      %p160 = scmp.ne.s32.totalorder %s143, %s159
      %p161 = scmp.eq.s32.totalorder %s19, 0
      %p162 = por %p160, %p161
      %p163 = scmp.le.s32.totalorder 1, %s13
      %p164 = scmp.lt.s32.totalorder %s13, 3
      %p165 = pnand %p163, %p164
      %p166 = pneg %p165
      // Predicated region
      $region9: #{tpu_custom_call.1} parent=5 // pred_check
        _
      $region10: #{tpu_custom_call.1} parent=5 // pred_check_branch
        %168 = sbr.rel (%p165) target = $region12
      $region11: #{tpu_custom_call.1} parent=5 // pred_region
        %s169 = ssub.s32 %s13, 1
        // Predicated region
        $region13: #{tpu_custom_call.1} parent=11 // pred_check
          %p170 = pneg %p77
        $region14: #{tpu_custom_call.1} parent=11 // pred_check_branch
          %172 = sbr.rel (%p170) target = $region16
        $region15: #{tpu_custom_call.1} parent=11 // pred_region
          %p173 = scmp.lt.s32.totalorder %s23, 0
          %s174 = scalar_select %p173, %s23, 0
          %s175 = smul.addr %s174, 4
          %s176 = scalar_lea.vmem %s1, %s175
        $region16: #{tpu_custom_call.1} parent=11 // pred_fallthru
          _
        // Predicated region
        $region17: #{tpu_custom_call.1} parent=11 // pred_check
          %p177 = pneg %p129
        $region18: #{tpu_custom_call.1} parent=11 // pred_check_branch
          %179 = sbr.rel (%p177) target = $region20
        $region19: #{tpu_custom_call.1} parent=11 // pred_region
          %p180 = scmp.lt.s32.totalorder %s23, 0
          %s181 = scalar_select %p180, %s23, 0
          %s182 = smul.addr %s181, 4
          %s183 = scalar_lea.vmem %s3, %s182
        $region20: #{tpu_custom_call.1} parent=11 // pred_fallthru
          _
      $region12: #{tpu_custom_call.1} parent=5 // pred_fallthru
        _
      %p184 = scmp.lt.s32.totalorder %s13, 2
      // Predicated region
      $region21: #{tpu_custom_call.1} parent=5 // pred_check
        %p185 = pneg %p184
      $region22: #{tpu_custom_call.1} parent=5 // pred_check_branch
        %187 = sbr.rel (%p185) target = $region24
      $region23: #{tpu_custom_call.1} parent=5 // pred_region
        // Predicated region
        $region25: #{tpu_custom_call.1} parent=23 // pred_check
          %p188 = pneg %p45
        $region26: #{tpu_custom_call.1} parent=23 // pred_check_branch
          %190 = sbr.rel (%p188) target = $region28
        $region27: #{tpu_custom_call.1} parent=23 // pred_region
          %s191 = smul.u32 8, %s20
          %p192 = scmp.lt.s32.totalorder %s191, 15
          %s193 = scalar_select %p192, %s191, 15
          %s194 = smul.addr %s193, 8
          %s195 = scalar_lea.vmem %s0, %s194
          %s196 = smul.u32 8, %s20
        $region28: #{tpu_custom_call.1} parent=23 // pred_fallthru
          _
        // Predicated region
        $region29: #{tpu_custom_call.1} parent=23 // pred_check
          %p197 = pneg %p97
        $region30: #{tpu_custom_call.1} parent=23 // pred_check_branch
          %199 = sbr.rel (%p197) target = $region32
        $region31: #{tpu_custom_call.1} parent=23 // pred_region
          %s200 = smul.u32 8, %s20
          %p201 = scmp.lt.s32.totalorder %s200, 15
          %s202 = scalar_select %p201, %s200, 15
          %s203 = smul.addr %s202, 4
          %s204 = scalar_lea.vmem %s2, %s203
          %s205 = smul.u32 8, %s20
        $region32: #{tpu_custom_call.1} parent=23 // pred_fallthru
          _
      $region24: #{tpu_custom_call.1} parent=5 // pred_fallthru
        _
      %p206 = scmp.le.s32.totalorder 1, %s13
      %p207 = scmp.lt.s32.totalorder %s13, 3
      %p208 = pnand %p206, %p207
      %p209 = pneg %p208
      // Predicated region
      $region33: #{tpu_custom_call.1} parent=5 // pred_check
        _
      $region34: #{tpu_custom_call.1} parent=5 // pred_check_branch
        %211 = sbr.rel (%p208) target = $region36
      $region35: #{tpu_custom_call.1} parent=5 // pred_region
        %s212 = ssub.s32 %s13, 1
        %s213 = smul.u32 8, %s22
        %p214 = scmp.lt.s32.totalorder %s213, 15
        %s215 = scalar_select %p214, %s213, 15
        %s216 = smul.addr %s215, 8
        %s217 = scalar_lea.vmem %s0, %s216
        %p218 = pneg %p51
        %p219 = pneg %p48
        %p220 = scmp.lt.s32.totalorder %s23, 0
        %s221 = scalar_select %p220, %s23, 0
        %s222 = smul.addr %s221, 4
        %s223 = scalar_lea.vmem %s1, %s222
        %p224 = pneg %p77
        %p225 = pneg %p74
        %s226 = smul.u32 8, %s22
        %p227 = scmp.lt.s32.totalorder %s226, 15
        %s228 = scalar_select %p227, %s226, 15
        %s229 = smul.addr %s228, 4
        %s230 = scalar_lea.vmem %s2, %s229
        %p231 = pneg %p103
        %p232 = pneg %p100
        %p233 = scmp.lt.s32.totalorder %s23, 0
        %s234 = scalar_select %p233, %s23, 0
        %s235 = smul.addr %s234, 4
        %s236 = scalar_lea.vmem %s3, %s235
        %p237 = pneg %p129
        %p238 = pneg %p126
        %p239 = pneg %p155
        %p240 = pneg %p152
        %s241 = sand.u32 %s142, 1
        %s242 = scalar_lea.sflag [#allocation7], %s241
        %s243 = sand.u32 %s142, 1
        %s244 = scalar_lea.vmem [#allocation6], %s243
        %s245 = smul.u32 8, %s22
        %p246 = scmp.lt.s32.totalorder %s245, 15
        %s247 = scalar_select %p246, %s245, 15
        %s248 = smul.addr %s247, 8
        %s249 = scalar_lea.vmem %s0, %s248
        %s250 = smul.u32 8, %s22
        %p251 = scmp.lt.s32.totalorder %s23, 0
        %s252 = scalar_select %p251, %s23, 0
        %s253 = smul.addr %s252, 4
        %s254 = scalar_lea.vmem %s1, %s253
        %s255 = smul.u32 8, %s22
        %p256 = scmp.lt.s32.totalorder %s255, 15
        %s257 = scalar_select %p256, %s255, 15
        %s258 = smul.addr %s257, 4
        %s259 = scalar_lea.vmem %s2, %s258
        %s260 = smul.u32 8, %s22
        %p261 = scmp.lt.s32.totalorder %s23, 0
        %s262 = scalar_select %p261, %s23, 0
        %s263 = smul.addr %s262, 4
        %s264 = scalar_lea.vmem %s3, %s263
        %p266 = scmp.eq.s32.totalorder %s23, 0
        // Predicated region
        $region37: #{tpu_custom_call.1} parent=35 // pred_check
          %p267 = pneg %p266
        $region38: #{tpu_custom_call.1} parent=35 // pred_check_branch
          %269 = sbr.rel (%p267) target = $region40
        $region39: #{tpu_custom_call.1} parent=35 // pred_region
          %vm270 = vcmask 7168
          %271 = vst.msk [vmem:[#allocation2] sm:$0xff] %vm270, -1e+30
          %272 = vst.msk [vmem:[#allocation2 + $0x8] sm:$0xff] %vm270, -1e+30
          %273 = vst.msk [vmem:[#allocation2 + $0x10] sm:$0xff] %vm270, -1e+30
          %274 = vst.msk [vmem:[#allocation2 + $0x18] sm:$0xff] %vm270, -1e+30
          %275 = vst.msk [vmem:[#allocation2 + $0x20] sm:$0xff] %vm270, -1e+30
          %276 = vst.msk [vmem:[#allocation2 + $0x28] sm:$0xff] %vm270, -1e+30
          %277 = vst.msk [vmem:[#allocation2 + $0x30] sm:$0xff] %vm270, -1e+30
          %278 = vst.msk [vmem:[#allocation2 + $0x38] sm:$0xff] %vm270, -1e+30
          %279 = vst.msk [vmem:[#allocation3] sm:$0xff] %vm270, 0.0
          %280 = vst.msk [vmem:[#allocation3 + $0x8] sm:$0xff] %vm270, 0.0
          %281 = vst.msk [vmem:[#allocation3 + $0x10] sm:$0xff] %vm270, 0.0
          %282 = vst.msk [vmem:[#allocation3 + $0x18] sm:$0xff] %vm270, 0.0
          %283 = vst.msk [vmem:[#allocation3 + $0x20] sm:$0xff] %vm270, 0.0
          %284 = vst.msk [vmem:[#allocation3 + $0x28] sm:$0xff] %vm270, 0.0
          %285 = vst.msk [vmem:[#allocation3 + $0x30] sm:$0xff] %vm270, 0.0
          %286 = vst.msk [vmem:[#allocation3 + $0x38] sm:$0xff] %vm270, 0.0
          %287 = vst.msk [vmem:[#allocation4] sm:$0xff] %vm270, 0.0
          %288 = vst.msk [vmem:[#allocation4 + $0x8] sm:$0xff] %vm270, 0.0
          %289 = vst.msk [vmem:[#allocation4 + $0x10] sm:$0xff] %vm270, 0.0
          %290 = vst.msk [vmem:[#allocation4 + $0x18] sm:$0xff] %vm270, 0.0
          %291 = vst.msk [vmem:[#allocation4 + $0x20] sm:$0xff] %vm270, 0.0
          %292 = vst.msk [vmem:[#allocation4 + $0x28] sm:$0xff] %vm270, 0.0
          %293 = vst.msk [vmem:[#allocation4 + $0x30] sm:$0xff] %vm270, 0.0
          %294 = vst.msk [vmem:[#allocation4 + $0x38] sm:$0xff] %vm270, 0.0
          %295 = vst.msk [vmem:[#allocation5] sm:$0xff] %vm270, 0.0
          %296 = vst.msk [vmem:[#allocation5 + $0x8] sm:$0xff] %vm270, 0.0
          %297 = vst.msk [vmem:[#allocation5 + $0x10] sm:$0xff] %vm270, 0.0
          %298 = vst.msk [vmem:[#allocation5 + $0x18] sm:$0xff] %vm270, 0.0
          %299 = vst.msk [vmem:[#allocation5 + $0x20] sm:$0xff] %vm270, 0.0
          %300 = vst.msk [vmem:[#allocation5 + $0x28] sm:$0xff] %vm270, 0.0
          %301 = vst.msk [vmem:[#allocation5 + $0x30] sm:$0xff] %vm270, 0.0
          %302 = vst.msk [vmem:[#allocation5 + $0x38] sm:$0xff] %vm270, 0.0
        $region40: #{tpu_custom_call.1} parent=35 // pred_fallthru
          _
        %v303 = vld [vmem:[%s249] sm:$0xff]
        %v304 = vld [vmem:[%s249 + $0x8] sm:$0xff]
        %v305 = vld [vmem:[%s249 + $0x10] sm:$0xff]
        %v306 = vld [vmem:[%s249 + $0x18] sm:$0xff]
        %v307 = vld [vmem:[%s249 + $0x20] sm:$0xff]
        %v308 = vld [vmem:[%s249 + $0x28] sm:$0xff]
        %v309 = vld [vmem:[%s249 + $0x30] sm:$0xff]
        %v310 = vld [vmem:[%s249 + $0x38] sm:$0xff]
        %v311 = vld [vmem:[%s254] sm:$0x1]
        %v312 = vld [vmem:[%s254 + $0x1] sm:$0x1]
        %v313 = vld [vmem:[%s254 + $0x2] sm:$0x1]
        %315 = vset.pattern.permute.xlu0 1
        %316 = vperm.xlu0 %315, %v303
        %v317 = vpop.permute.xlu0 %316
        %320 = vset.pattern.permute.xlu0 1
        %321 = vperm.xlu0 %320, %v304
        %v322 = vpop.permute.xlu0 %321
        %325 = vset.pattern.permute.xlu0 1
        %326 = vperm.xlu0 %325, %v305
        %v327 = vpop.permute.xlu0 %326
        %330 = vset.pattern.permute.xlu0 1
        %331 = vperm.xlu0 %330, %v306
        %v332 = vpop.permute.xlu0 %331
        %335 = vset.pattern.permute.xlu0 1
        %336 = vperm.xlu0 %335, %v307
        %v337 = vpop.permute.xlu0 %336
        %340 = vset.pattern.permute.xlu0 1
        %341 = vperm.xlu0 %340, %v308
        %v342 = vpop.permute.xlu0 %341
        %345 = vset.pattern.permute.xlu0 1
        %346 = vperm.xlu0 %345, %v309
        %v347 = vpop.permute.xlu0 %346
        %350 = vset.pattern.permute.xlu0 1
        %351 = vperm.xlu0 %350, %v310
        %v352 = vpop.permute.xlu0 %351
        %v354 = vlaneseq
        %v355 = vshrl.u32 %v354, 7
        %v356 = vsub.s32 0, %v355
        %v357 = vrot.slane %v312, %v356
        %v358 = vmul.f32 %v317, %v357
        %v359 = vmul.f32 %v322, %v357
        %v360 = vmul.f32 %v327, %v357
        %v361 = vmul.f32 %v332, %v357
        %v362 = vmul.f32 %v337, %v357
        %v363 = vmul.f32 %v342, %v357
        %v364 = vmul.f32 %v347, %v357
        %v365 = vmul.f32 %v352, %v357
        %366 = vset.pattern.permute.xlu0 2
        %367 = vperm.xlu0 %366, %v303
        %v368 = vpop.permute.xlu0 %367
        %370 = vset.pattern.permute.xlu0 2
        %371 = vperm.xlu0 %370, %v304
        %v372 = vpop.permute.xlu0 %371
        %374 = vset.pattern.permute.xlu0 2
        %375 = vperm.xlu0 %374, %v305
        %v376 = vpop.permute.xlu0 %375
        %378 = vset.pattern.permute.xlu0 2
        %379 = vperm.xlu0 %378, %v306
        %v380 = vpop.permute.xlu0 %379
        %382 = vset.pattern.permute.xlu0 2
        %383 = vperm.xlu0 %382, %v307
        %v384 = vpop.permute.xlu0 %383
        %386 = vset.pattern.permute.xlu0 2
        %387 = vperm.xlu0 %386, %v308
        %v388 = vpop.permute.xlu0 %387
        %390 = vset.pattern.permute.xlu0 2
        %391 = vperm.xlu0 %390, %v309
        %v392 = vpop.permute.xlu0 %391
        %394 = vset.pattern.permute.xlu0 2
        %395 = vperm.xlu0 %394, %v310
        %v396 = vpop.permute.xlu0 %395
        %v398 = vlaneseq
        %v399 = vshrl.u32 %v398, 7
        %v400 = vsub.s32 0, %v399
        %v401 = vrot.slane %v313, %v400
        %v402 = vmul.f32 %v368, %v401
        %v403 = vmul.f32 %v372, %v401
        %v404 = vmul.f32 %v376, %v401
        %v405 = vmul.f32 %v380, %v401
        %v406 = vmul.f32 %v384, %v401
        %v407 = vmul.f32 %v388, %v401
        %v408 = vmul.f32 %v392, %v401
        %v409 = vmul.f32 %v396, %v401
        %v410 = vadd.f32 %v358, %v402
        %v411 = vadd.f32 %v359, %v403
        %v412 = vadd.f32 %v360, %v404
        %v413 = vadd.f32 %v361, %v405
        %v414 = vadd.f32 %v362, %v406
        %v415 = vadd.f32 %v363, %v407
        %v416 = vadd.f32 %v364, %v408
        %v417 = vadd.f32 %v365, %v409
        %v418 = vsub.f32 0.0, %v410
        %v419 = vsub.f32 0.0, %v411
        %v420 = vsub.f32 0.0, %v412
        %v421 = vsub.f32 0.0, %v413
        %v422 = vsub.f32 0.0, %v414
        %v423 = vsub.f32 0.0, %v415
        %v424 = vsub.f32 0.0, %v416
        %v425 = vsub.f32 0.0, %v417
        %v426 = vmul.f32 %v368, %v357
        %v427 = vmul.f32 %v372, %v357
        %v428 = vmul.f32 %v376, %v357
        %v429 = vmul.f32 %v380, %v357
        %v430 = vmul.f32 %v384, %v357
        %v431 = vmul.f32 %v388, %v357
        %v432 = vmul.f32 %v392, %v357
        %v433 = vmul.f32 %v396, %v357
        %v434 = vmul.f32 %v317, %v401
        %v435 = vmul.f32 %v322, %v401
        %v436 = vmul.f32 %v327, %v401
        %v437 = vmul.f32 %v332, %v401
        %v438 = vmul.f32 %v337, %v401
        %v439 = vmul.f32 %v342, %v401
        %v440 = vmul.f32 %v347, %v401
        %v441 = vmul.f32 %v352, %v401
        %v442 = vsub.f32 %v426, %v434
        %v443 = vsub.f32 %v427, %v435
        %v444 = vsub.f32 %v428, %v436
        %v445 = vsub.f32 %v429, %v437
        %v446 = vsub.f32 %v430, %v438
        %v447 = vsub.f32 %v431, %v439
        %v448 = vsub.f32 %v432, %v440
        %v449 = vsub.f32 %v433, %v441
        %v450 = vand.u32 2147483647, %v442
        %v451 = vand.u32 2147483647, %v443
        %v452 = vand.u32 2147483647, %v444
        %v453 = vand.u32 2147483647, %v445
        %v454 = vand.u32 2147483647, %v446
        %v455 = vand.u32 2147483647, %v447
        %v456 = vand.u32 2147483647, %v448
        %v457 = vand.u32 2147483647, %v449
        %458 = vset.pattern.permute.xlu0 0
        %459 = vperm.xlu0 %458, %v303
        %v460 = vpop.permute.xlu0 %459
        %462 = vset.pattern.permute.xlu0 0
        %463 = vperm.xlu0 %462, %v304
        %v464 = vpop.permute.xlu0 %463
        %466 = vset.pattern.permute.xlu0 0
        %467 = vperm.xlu0 %466, %v305
        %v468 = vpop.permute.xlu0 %467
        %470 = vset.pattern.permute.xlu0 0
        %471 = vperm.xlu0 %470, %v306
        %v472 = vpop.permute.xlu0 %471
        %474 = vset.pattern.permute.xlu0 0
        %475 = vperm.xlu0 %474, %v307
        %v476 = vpop.permute.xlu0 %475
        %478 = vset.pattern.permute.xlu0 0
        %479 = vperm.xlu0 %478, %v308
        %v480 = vpop.permute.xlu0 %479
        %482 = vset.pattern.permute.xlu0 0
        %483 = vperm.xlu0 %482, %v309
        %v484 = vpop.permute.xlu0 %483
        %486 = vset.pattern.permute.xlu0 0
        %487 = vperm.xlu0 %486, %v310
        %v488 = vpop.permute.xlu0 %487
        %v490 = vlaneseq
        %v491 = vshrl.u32 %v490, 7
        %v492 = vsub.s32 0, %v491
        %v493 = vrot.slane %v311, %v492
        %vm494 = vcmp.eq.f32.partialorder %v460, %v493
        %vm495 = vcmp.eq.f32.partialorder %v464, %v493
        %vm496 = vcmp.eq.f32.partialorder %v468, %v493
        %vm497 = vcmp.eq.f32.partialorder %v472, %v493
        %vm498 = vcmp.eq.f32.partialorder %v476, %v493
        %vm499 = vcmp.eq.f32.partialorder %v480, %v493
        %vm500 = vcmp.eq.f32.partialorder %v484, %v493
        %vm501 = vcmp.eq.f32.partialorder %v488, %v493
        %s502 = smul.u32 %s22, 64
        %v503 = vlaneseq
        %v504 = vshrl.u32 %v503, 7
        %v505 = vadd.s32 %v504, 8
        %v506 = vadd.s32 %v504, 16
        %v507 = vadd.s32 %v504, 24
        %v508 = vadd.s32 %v504, 32
        %v509 = vadd.s32 %v504, 40
        %v510 = vadd.s32 %v504, 48
        %v511 = vadd.s32 %v504, 56
        %v512 = vstv %s502
        %v513 = vadd.s32 %v512, %v504
        %v514 = vadd.s32 %v512, %v505
        %v515 = vadd.s32 %v512, %v506
        %v516 = vadd.s32 %v512, %v507
        %v517 = vadd.s32 %v512, %v508
        %v518 = vadd.s32 %v512, %v509
        %v519 = vadd.s32 %v512, %v510
        %v520 = vadd.s32 %v512, %v511
        %s521 = smul.u32 %s23, 128
        %v522 = vlaneseq
        %v523 = vand.u32 %v522, 127
        %v524 = vstv %s521
        %v525 = vadd.s32 %v524, %v523
        %vm526 = vcmp.lt.s32.totalorder %v525, 8
        %vm527 = vcmp.ne.s32.totalorder %v513, %v525
        %vm528 = vcmp.ne.s32.totalorder %v514, %v525
        %vm529 = vcmp.ne.s32.totalorder %v515, %v525
        %vm530 = vcmp.ne.s32.totalorder %v516, %v525
        %vm531 = vcmp.ne.s32.totalorder %v517, %v525
        %vm532 = vcmp.ne.s32.totalorder %v518, %v525
        %vm533 = vcmp.ne.s32.totalorder %v519, %v525
        %vm534 = vcmp.ne.s32.totalorder %v520, %v525
        %v535 = vld [vmem:[%s259] sm:$0xf]
        %v536 = vld [vmem:[%s259 + $0x4] sm:$0xf]
        %v537 = vld [vmem:[%s259 + $0x8] sm:$0xf]
        %v538 = vld [vmem:[%s259 + $0xc] sm:$0xf]
        %v539 = vld [vmem:[%s259 + $0x10] sm:$0xf]
        %v540 = vld [vmem:[%s259 + $0x14] sm:$0xf]
        %v541 = vld [vmem:[%s259 + $0x18] sm:$0xf]
        %v542 = vld [vmem:[%s259 + $0x1c] sm:$0xf]
        %v543 = vld [vmem:[%s264] sm:$0xf]
        %v544 = vld [vmem:[%s264 + $0x4] sm:$0xf]
        %v545 = vld [vmem:[%s264 + $0x8] sm:$0xf]
        %v546 = vld [vmem:[%s264 + $0xc] sm:$0xf]
        %v555 = vunpack.c.l.b16 %v535
        %v556 = vunpack.c.l.b16 %v536
        %v557 = vunpack.c.l.b16 %v537
        %v558 = vunpack.c.l.b16 %v538
        %v559 = vunpack.c.l.b16 %v539
        %v560 = vunpack.c.l.b16 %v540
        %v561 = vunpack.c.l.b16 %v541
        %v562 = vunpack.c.l.b16 %v542
        %v563 = vpack.c.b16 %v556, %v555
        %v564 = vpack.c.b16 %v558, %v557
        %v565 = vpack.c.b16 %v560, %v559
        %v566 = vpack.c.b16 %v562, %v561
        %v571 = vunpack.c.l.b16 %v543
        %v572 = vunpack.c.l.b16 %v544
        %v573 = vunpack.c.l.b16 %v545
        %v574 = vunpack.c.l.b16 %v546
        %v575 = vpack.c.b16 %v572, %v571
        %v576 = vpack.c.b16 %v574, %v573
        %vm579 = vcmask 261120
        %v581 = vsel %vm579, %v563, 0
        %v584 = vsel %vm579, %v564, 0
        %v587 = vsel %vm579, %v565, 0
        %v590 = vsel %vm579, %v566, 0
        %592 = vmatprep.subr.bf16.mxu0 0
        %593 = vmatpush1.bf16.msra.mxu0 0
        %594 = vmatprep.subr.bf16.mxu0 0
        %595 = vmatpush1.bf16.msra.mxu0 0
        %596 = vmatprep.subr.bf16.mxu0 0
        %597 = vmatpush1.bf16.msra.mxu0 0
        %598 = vmatprep.subr.bf16.mxu0 0
        %599 = vmatpush1.bf16.msra.mxu0 0
        %600 = vmatprep.subr.bf16.mxu0 0
        %601 = vmatpush1.bf16.msra.mxu0 0
        %602 = vmatprep.subr.bf16.mxu0 0
        %603 = vmatpush1.bf16.msra.mxu0 0
        %604 = vmatprep.subr.bf16.mxu0 0
        %605 = vmatpush1.bf16.msra.mxu0 %v576
        %606 = vmatprep.subr.bf16.mxu0 0
        %607 = vmatpush1.bf16.msra.mxu0 %v575
        %608 = vmatprep.subr.bf16.mxu0 0
        %609 = vmatpush2.bf16.msra.mxu0 0
        %610 = vmatprep.subr.bf16.mxu0 0
        %611 = vmatpush2.bf16.msra.mxu0 0
        %612 = vmatprep.subr.bf16.mxu0 0
        %613 = vmatpush2.bf16.msra.mxu0 0
        %614 = vmatprep.subr.bf16.mxu0 0
        %615 = vmatpush2.bf16.msra.mxu0 0
        %616 = vmatprep.subr.bf16.mxu0 0
        %617 = vmatpush2.bf16.msra.mxu0 0
        %618 = vmatprep.subr.bf16.mxu0 0
        %619 = vmatpush2.bf16.msra.mxu0 0
        %620 = vmatprep.subr.bf16.mxu0 0
        %621 = vmatpush2.bf16.msra.mxu0 0
        %622 = vmatprep.subr.bf16.mxu0 0
        %623 = vmatpush2.bf16.msra.mxu0 0
        %624 = vmatprep.mubr.bf16.mxu0 0
        %625 = vmatmul.mubr.bf16.gmra.mxu0 %v581
        %v626 = vpop.f32.mrf.mxu0
        %v627 = vadd.f32 0.0, %v626
        %v628 = vpop.f32.mrf.mxu0
        %v629 = vpop.f32.mrf.mxu0
        %v630 = vadd.f32 0.0, %v629
        %v631 = vpop.f32.mrf.mxu0
        %632 = vmatprep.mubr.bf16.mxu0 0
        %633 = vmatmul.mubr.bf16.gmra.mxu0 %v584
        %v634 = vpop.f32.mrf.mxu0
        %v635 = vadd.f32 0.0, %v634
        %v636 = vpop.f32.mrf.mxu0
        %v637 = vpop.f32.mrf.mxu0
        %v638 = vadd.f32 0.0, %v637
        %v639 = vpop.f32.mrf.mxu0
        %640 = vmatprep.mubr.bf16.mxu0 0
        %641 = vmatmul.mubr.bf16.gmra.mxu0 %v587
        %v642 = vpop.f32.mrf.mxu0
        %v643 = vadd.f32 0.0, %v642
        %v644 = vpop.f32.mrf.mxu0
        %v645 = vpop.f32.mrf.mxu0
        %v646 = vadd.f32 0.0, %v645
        %v647 = vpop.f32.mrf.mxu0
        %648 = vmatprep.mubr.bf16.mxu0 0
        %649 = vmatmul.mubr.bf16.gmra.mxu0 %v590
        %v650 = vpop.f32.mrf.mxu0
        %v651 = vadd.f32 0.0, %v650
        %v652 = vpop.f32.mrf.mxu0
        %v653 = vpop.f32.mrf.mxu0
        %v654 = vadd.f32 0.0, %v653
        %v655 = vpop.f32.mrf.mxu0
        %656 = vdwg.mxu0
        %v657 = vmax.f32 %v627, -1.0
        %v658 = vmax.f32 %v630, -1.0
        %v659 = vmax.f32 %v635, -1.0
        %v660 = vmax.f32 %v638, -1.0
        %v661 = vmax.f32 %v643, -1.0
        %v662 = vmax.f32 %v646, -1.0
        %v663 = vmax.f32 %v651, -1.0
        %v664 = vmax.f32 %v654, -1.0
        %v665 = vmin.f32 %v657, 1.0
        %v666 = vmin.f32 %v658, 1.0
        %v667 = vmin.f32 %v659, 1.0
        %v668 = vmin.f32 %v660, 1.0
        %v669 = vmin.f32 %v661, 1.0
        %v670 = vmin.f32 %v662, 1.0
        %v671 = vmin.f32 %v663, 1.0
        %v672 = vmin.f32 %v664, 1.0
        %v673 = vmul.f32 %v665, %v665
        %v674 = vmul.f32 %v666, %v666
        %v675 = vmul.f32 %v667, %v667
        %v676 = vmul.f32 %v668, %v668
        %v677 = vmul.f32 %v669, %v669
        %v678 = vmul.f32 %v670, %v670
        %v679 = vmul.f32 %v671, %v671
        %v680 = vmul.f32 %v672, %v672
        %v681 = vsub.f32 1.0, %v673
        %v682 = vsub.f32 1.0, %v674
        %v683 = vsub.f32 1.0, %v675
        %v684 = vsub.f32 1.0, %v676
        %v685 = vsub.f32 1.0, %v677
        %v686 = vsub.f32 1.0, %v678
        %v687 = vsub.f32 1.0, %v679
        %v688 = vsub.f32 1.0, %v680
        %v689 = vadd.f32 %v681, 1e-06
        %v690 = vadd.f32 %v682, 1e-06
        %v691 = vadd.f32 %v683, 1e-06
        %v692 = vadd.f32 %v684, 1e-06
        %v693 = vadd.f32 %v685, 1e-06
        %v694 = vadd.f32 %v686, 1e-06
        %v695 = vadd.f32 %v687, 1e-06
        %v696 = vadd.f32 %v688, 1e-06
        %v697 = vrsqrt.pop %v689
        %v698 = vmul.f32 %v689, %v697
        %vm699 = vcmp.eq.f32.partialorder %v689, inf
        %v700 = vsel %vm699, %v689, %v698
        %vm701 = vcmp.eq.f32.partialorder %v689, 0.0
        %v702 = vand.u32 %v689, 2147483648
        %v703 = vsel %vm701, %v702, %v700
        %v704 = vrsqrt.pop %v690
        %v705 = vmul.f32 %v690, %v704
        %vm706 = vcmp.eq.f32.partialorder %v690, inf
        %v707 = vsel %vm706, %v690, %v705
        %vm708 = vcmp.eq.f32.partialorder %v690, 0.0
        %v709 = vand.u32 %v690, 2147483648
        %v710 = vsel %vm708, %v709, %v707
        %v711 = vrsqrt.pop %v691
        %v712 = vmul.f32 %v691, %v711
        %vm713 = vcmp.eq.f32.partialorder %v691, inf
        %v714 = vsel %vm713, %v691, %v712
        %vm715 = vcmp.eq.f32.partialorder %v691, 0.0
        %v716 = vand.u32 %v691, 2147483648
        %v717 = vsel %vm715, %v716, %v714
        %v718 = vrsqrt.pop %v692
        %v719 = vmul.f32 %v692, %v718
        %vm720 = vcmp.eq.f32.partialorder %v692, inf
        %v721 = vsel %vm720, %v692, %v719
        %vm722 = vcmp.eq.f32.partialorder %v692, 0.0
        %v723 = vand.u32 %v692, 2147483648
        %v724 = vsel %vm722, %v723, %v721
        %v725 = vrsqrt.pop %v693
        %v726 = vmul.f32 %v693, %v725
        %vm727 = vcmp.eq.f32.partialorder %v693, inf
        %v728 = vsel %vm727, %v693, %v726
        %vm729 = vcmp.eq.f32.partialorder %v693, 0.0
        %v730 = vand.u32 %v693, 2147483648
        %v731 = vsel %vm729, %v730, %v728
        %v732 = vrsqrt.pop %v694
        %v733 = vmul.f32 %v694, %v732
        %vm734 = vcmp.eq.f32.partialorder %v694, inf
        %v735 = vsel %vm734, %v694, %v733
        %vm736 = vcmp.eq.f32.partialorder %v694, 0.0
        %v737 = vand.u32 %v694, 2147483648
        %v738 = vsel %vm736, %v737, %v735
        %v739 = vrsqrt.pop %v695
        %v740 = vmul.f32 %v695, %v739
        %vm741 = vcmp.eq.f32.partialorder %v695, inf
        %v742 = vsel %vm741, %v695, %v740
        %vm743 = vcmp.eq.f32.partialorder %v695, 0.0
        %v744 = vand.u32 %v695, 2147483648
        %v745 = vsel %vm743, %v744, %v742
        %v746 = vrsqrt.pop %v696
        %v747 = vmul.f32 %v696, %v746
        %vm748 = vcmp.eq.f32.partialorder %v696, inf
        %v749 = vsel %vm748, %v696, %v747
        %vm750 = vcmp.eq.f32.partialorder %v696, 0.0
        %v751 = vand.u32 %v696, 2147483648
        %v752 = vsel %vm750, %v751, %v749
        %v753 = vmul.f32 %v665, %v418
        %v754 = vmul.f32 %v666, %v419
        %v755 = vmul.f32 %v667, %v420
        %v756 = vmul.f32 %v668, %v421
        %v757 = vmul.f32 %v669, %v422
        %v758 = vmul.f32 %v670, %v423
        %v759 = vmul.f32 %v671, %v424
        %v760 = vmul.f32 %v672, %v425
        %v761 = vmul.f32 %v703, %v450
        %v762 = vmul.f32 %v710, %v451
        %v763 = vmul.f32 %v717, %v452
        %v764 = vmul.f32 %v724, %v453
        %v765 = vmul.f32 %v731, %v454
        %v766 = vmul.f32 %v738, %v455
        %v767 = vmul.f32 %v745, %v456
        %v768 = vmul.f32 %v752, %v457
        %v769 = vsub.f32 %v753, %v761
        %v770 = vsub.f32 %v754, %v762
        %v771 = vsub.f32 %v755, %v763
        %v772 = vsub.f32 %v756, %v764
        %v773 = vsub.f32 %v757, %v765
        %v774 = vsub.f32 %v758, %v766
        %v775 = vsub.f32 %v759, %v767
        %v776 = vsub.f32 %v760, %v768
        %v777 = vld [vmem:[#allocation2] sm:$0xff]
        %v778 = vld [vmem:[#allocation2 + $0x8] sm:$0xff]
        %v779 = vld [vmem:[#allocation2 + $0x10] sm:$0xff]
        %v780 = vld [vmem:[#allocation2 + $0x18] sm:$0xff]
        %v781 = vld [vmem:[#allocation2 + $0x20] sm:$0xff]
        %v782 = vld [vmem:[#allocation2 + $0x28] sm:$0xff]
        %v783 = vld [vmem:[#allocation2 + $0x30] sm:$0xff]
        %v784 = vld [vmem:[#allocation2 + $0x38] sm:$0xff]
        %785 = vmax.xlane.f32.xlu0 %v665
        %v786 = vpop.xlane.xlu0 %785
        %787 = vmax.xlane.f32.xlu0 %v666
        %v788 = vpop.xlane.xlu0 %787
        %789 = vmax.xlane.f32.xlu0 %v667
        %v790 = vpop.xlane.xlu0 %789
        %791 = vmax.xlane.f32.xlu0 %v668
        %v792 = vpop.xlane.xlu0 %791
        %793 = vmax.xlane.f32.xlu0 %v669
        %v794 = vpop.xlane.xlu0 %793
        %795 = vmax.xlane.f32.xlu0 %v670
        %v796 = vpop.xlane.xlu0 %795
        %797 = vmax.xlane.f32.xlu0 %v671
        %v798 = vpop.xlane.xlu0 %797
        %799 = vmax.xlane.f32.xlu0 %v672
        %v800 = vpop.xlane.xlu0 %799
        %v801 = vmax.f32 %v777, %v786
        %v802 = vmax.f32 %v778, %v788
        %v803 = vmax.f32 %v779, %v790
        %v804 = vmax.f32 %v780, %v792
        %v805 = vmax.f32 %v781, %v794
        %v806 = vmax.f32 %v782, %v796
        %v807 = vmax.f32 %v783, %v798
        %v808 = vmax.f32 %v784, %v800
        %vm809 = vcmask 7168
        %810 = vst.msk [vmem:[#allocation2] sm:$0xff] %vm809, %v801
        %811 = vst.msk [vmem:[#allocation2 + $0x8] sm:$0xff] %vm809, %v802
        %812 = vst.msk [vmem:[#allocation2 + $0x10] sm:$0xff] %vm809, %v803
        %813 = vst.msk [vmem:[#allocation2 + $0x18] sm:$0xff] %vm809, %v804
        %814 = vst.msk [vmem:[#allocation2 + $0x20] sm:$0xff] %vm809, %v805
        %815 = vst.msk [vmem:[#allocation2 + $0x28] sm:$0xff] %vm809, %v806
        %816 = vst.msk [vmem:[#allocation2 + $0x30] sm:$0xff] %vm809, %v807
        %817 = vst.msk [vmem:[#allocation2 + $0x38] sm:$0xff] %vm809, %v808
        %v818 = vsel %vm494, %v665, %v769
        %v819 = vsel %vm495, %v666, %v770
        %v820 = vsel %vm496, %v667, %v771
        %v821 = vsel %vm497, %v668, %v772
        %v822 = vsel %vm498, %v669, %v773
        %v823 = vsel %vm499, %v670, %v774
        %v824 = vsel %vm500, %v671, %v775
        %v825 = vsel %vm501, %v672, %v776
        %v826 = vmul.f32 %v818, 1.442695
        %v827 = vpow.pop %v826
        %v828 = vmul.f32 %v819, 1.442695
        %v829 = vpow.pop %v828
        %v830 = vmul.f32 %v820, 1.442695
        %v831 = vpow.pop %v830
        %v832 = vmul.f32 %v821, 1.442695
        %v833 = vpow.pop %v832
        %v834 = vmul.f32 %v822, 1.442695
        %v835 = vpow.pop %v834
        %v836 = vmul.f32 %v823, 1.442695
        %v837 = vpow.pop %v836
        %v838 = vmul.f32 %v824, 1.442695
        %v839 = vpow.pop %v838
        %v840 = vmul.f32 %v825, 1.442695
        %v841 = vpow.pop %v840
        %vm842 = vmand %vm494, %vm527
        %vm843 = vmand %vm495, %vm528
        %vm844 = vmand %vm496, %vm529
        %vm845 = vmand %vm497, %vm530
        %vm846 = vmand %vm498, %vm531
        %vm847 = vmand %vm499, %vm532
        %vm848 = vmand %vm500, %vm533
        %vm849 = vmand %vm501, %vm534
        %v850 = vsel %vm526, 1, 0
        %vm851 = vcmp.eq.s32.totalorder %v850, 1
        %vm852 = vmand %vm842, %vm851
        %vm853 = vmand %vm843, %vm851
        %vm854 = vmand %vm844, %vm851
        %vm855 = vmand %vm845, %vm851
        %vm856 = vmand %vm846, %vm851
        %vm857 = vmand %vm847, %vm851
        %vm858 = vmand %vm848, %vm851
        %vm859 = vmand %vm849, %vm851
        %vm860 = vmxor %vm494, 1
        %vm861 = vmxor %vm495, 1
        %vm862 = vmxor %vm496, 1
        %vm863 = vmxor %vm497, 1
        %vm864 = vmxor %vm498, 1
        %vm865 = vmxor %vm499, 1
        %vm866 = vmxor %vm500, 1
        %vm867 = vmxor %vm501, 1
        %vm868 = vmand %vm860, %vm851
        %vm869 = vmand %vm861, %vm851
        %vm870 = vmand %vm862, %vm851
        %vm871 = vmand %vm863, %vm851
        %vm872 = vmand %vm864, %vm851
        %vm873 = vmand %vm865, %vm851
        %vm874 = vmand %vm866, %vm851
        %vm875 = vmand %vm867, %vm851
        %v876 = vld [vmem:[#allocation3] sm:$0xff]
        %v877 = vld [vmem:[#allocation3 + $0x8] sm:$0xff]
        %v878 = vld [vmem:[#allocation3 + $0x10] sm:$0xff]
        %v879 = vld [vmem:[#allocation3 + $0x18] sm:$0xff]
        %v880 = vld [vmem:[#allocation3 + $0x20] sm:$0xff]
        %v881 = vld [vmem:[#allocation3 + $0x28] sm:$0xff]
        %v882 = vld [vmem:[#allocation3 + $0x30] sm:$0xff]
        %v883 = vld [vmem:[#allocation3 + $0x38] sm:$0xff]
        %v884 = vsel %vm852, %v827, 0.0
        %v885 = vsel %vm853, %v829, 0.0
        %v886 = vsel %vm854, %v831, 0.0
        %v887 = vsel %vm855, %v833, 0.0
        %v888 = vsel %vm856, %v835, 0.0
        %v889 = vsel %vm857, %v837, 0.0
        %v890 = vsel %vm858, %v839, 0.0
        %v891 = vsel %vm859, %v841, 0.0
        %892 = vadd.xlane.f32.xlu0 %v884
        %v893 = vpop.xlane.xlu0 %892
        %894 = vadd.xlane.f32.xlu0 %v885
        %v895 = vpop.xlane.xlu0 %894
        %896 = vadd.xlane.f32.xlu0 %v886
        %v897 = vpop.xlane.xlu0 %896
        %898 = vadd.xlane.f32.xlu0 %v887
        %v899 = vpop.xlane.xlu0 %898
        %900 = vadd.xlane.f32.xlu0 %v888
        %v901 = vpop.xlane.xlu0 %900
        %902 = vadd.xlane.f32.xlu0 %v889
        %v903 = vpop.xlane.xlu0 %902
        %904 = vadd.xlane.f32.xlu0 %v890
        %v905 = vpop.xlane.xlu0 %904
        %906 = vadd.xlane.f32.xlu0 %v891
        %v907 = vpop.xlane.xlu0 %906
        %v908 = vadd.f32 %v876, %v893
        %v909 = vadd.f32 %v877, %v895
        %v910 = vadd.f32 %v878, %v897
        %v911 = vadd.f32 %v879, %v899
        %v912 = vadd.f32 %v880, %v901
        %v913 = vadd.f32 %v881, %v903
        %v914 = vadd.f32 %v882, %v905
        %v915 = vadd.f32 %v883, %v907
        %916 = vst.msk [vmem:[#allocation3] sm:$0xff] %vm809, %v908
        %917 = vst.msk [vmem:[#allocation3 + $0x8] sm:$0xff] %vm809, %v909
        %918 = vst.msk [vmem:[#allocation3 + $0x10] sm:$0xff] %vm809, %v910
        %919 = vst.msk [vmem:[#allocation3 + $0x18] sm:$0xff] %vm809, %v911
        %920 = vst.msk [vmem:[#allocation3 + $0x20] sm:$0xff] %vm809, %v912
        %921 = vst.msk [vmem:[#allocation3 + $0x28] sm:$0xff] %vm809, %v913
        %922 = vst.msk [vmem:[#allocation3 + $0x30] sm:$0xff] %vm809, %v914
        %923 = vst.msk [vmem:[#allocation3 + $0x38] sm:$0xff] %vm809, %v915
        %v924 = vld [vmem:[#allocation4] sm:$0xff]
        %v925 = vld [vmem:[#allocation4 + $0x8] sm:$0xff]
        %v926 = vld [vmem:[#allocation4 + $0x10] sm:$0xff]
        %v927 = vld [vmem:[#allocation4 + $0x18] sm:$0xff]
        %v928 = vld [vmem:[#allocation4 + $0x20] sm:$0xff]
        %v929 = vld [vmem:[#allocation4 + $0x28] sm:$0xff]
        %v930 = vld [vmem:[#allocation4 + $0x30] sm:$0xff]
        %v931 = vld [vmem:[#allocation4 + $0x38] sm:$0xff]
        %v932 = vsel %vm868, %v827, 0.0
        %v933 = vsel %vm869, %v829, 0.0
        %v934 = vsel %vm870, %v831, 0.0
        %v935 = vsel %vm871, %v833, 0.0
        %v936 = vsel %vm872, %v835, 0.0
        %v937 = vsel %vm873, %v837, 0.0
        %v938 = vsel %vm874, %v839, 0.0
        %v939 = vsel %vm875, %v841, 0.0
        %940 = vadd.xlane.f32.xlu0 %v932
        %v941 = vpop.xlane.xlu0 %940
        %942 = vadd.xlane.f32.xlu0 %v933
        %v943 = vpop.xlane.xlu0 %942
        %944 = vadd.xlane.f32.xlu0 %v934
        %v945 = vpop.xlane.xlu0 %944
        %946 = vadd.xlane.f32.xlu0 %v935
        %v947 = vpop.xlane.xlu0 %946
        %948 = vadd.xlane.f32.xlu0 %v936
        %v949 = vpop.xlane.xlu0 %948
        %950 = vadd.xlane.f32.xlu0 %v937
        %v951 = vpop.xlane.xlu0 %950
        %952 = vadd.xlane.f32.xlu0 %v938
        %v953 = vpop.xlane.xlu0 %952
        %954 = vadd.xlane.f32.xlu0 %v939
        %v955 = vpop.xlane.xlu0 %954
        %v956 = vadd.f32 %v924, %v941
        %v957 = vadd.f32 %v925, %v943
        %v958 = vadd.f32 %v926, %v945
        %v959 = vadd.f32 %v927, %v947
        %v960 = vadd.f32 %v928, %v949
        %v961 = vadd.f32 %v929, %v951
        %v962 = vadd.f32 %v930, %v953
        %v963 = vadd.f32 %v931, %v955
        %964 = vst.msk [vmem:[#allocation4] sm:$0xff] %vm809, %v956
        %965 = vst.msk [vmem:[#allocation4 + $0x8] sm:$0xff] %vm809, %v957
        %966 = vst.msk [vmem:[#allocation4 + $0x10] sm:$0xff] %vm809, %v958
        %967 = vst.msk [vmem:[#allocation4 + $0x18] sm:$0xff] %vm809, %v959
        %968 = vst.msk [vmem:[#allocation4 + $0x20] sm:$0xff] %vm809, %v960
        %969 = vst.msk [vmem:[#allocation4 + $0x28] sm:$0xff] %vm809, %v961
        %970 = vst.msk [vmem:[#allocation4 + $0x30] sm:$0xff] %vm809, %v962
        %971 = vst.msk [vmem:[#allocation4 + $0x38] sm:$0xff] %vm809, %v963
        %v972 = vld [vmem:[#allocation5] sm:$0xff]
        %v973 = vld [vmem:[#allocation5 + $0x8] sm:$0xff]
        %v974 = vld [vmem:[#allocation5 + $0x10] sm:$0xff]
        %v975 = vld [vmem:[#allocation5 + $0x18] sm:$0xff]
        %v976 = vld [vmem:[#allocation5 + $0x20] sm:$0xff]
        %v977 = vld [vmem:[#allocation5 + $0x28] sm:$0xff]
        %v978 = vld [vmem:[#allocation5 + $0x30] sm:$0xff]
        %v979 = vld [vmem:[#allocation5 + $0x38] sm:$0xff]
        %vm980 = vmand %vm494, %vm851
        %vm981 = vmand %vm495, %vm851
        %vm982 = vmand %vm496, %vm851
        %vm983 = vmand %vm497, %vm851
        %vm984 = vmand %vm498, %vm851
        %vm985 = vmand %vm499, %vm851
        %vm986 = vmand %vm500, %vm851
        %vm987 = vmand %vm501, %vm851
        %v988 = vsel %vm980, %v665, 0.0
        %v989 = vsel %vm981, %v666, 0.0
        %v990 = vsel %vm982, %v667, 0.0
        %v991 = vsel %vm983, %v668, 0.0
        %v992 = vsel %vm984, %v669, 0.0
        %v993 = vsel %vm985, %v670, 0.0
        %v994 = vsel %vm986, %v671, 0.0
        %v995 = vsel %vm987, %v672, 0.0
        %996 = vadd.xlane.f32.xlu0 %v988
        %v997 = vpop.xlane.xlu0 %996
        %998 = vadd.xlane.f32.xlu0 %v989
        %v999 = vpop.xlane.xlu0 %998
        %1000 = vadd.xlane.f32.xlu0 %v990
        %v1001 = vpop.xlane.xlu0 %1000
        %1002 = vadd.xlane.f32.xlu0 %v991
        %v1003 = vpop.xlane.xlu0 %1002
        %1004 = vadd.xlane.f32.xlu0 %v992
        %v1005 = vpop.xlane.xlu0 %1004
        %1006 = vadd.xlane.f32.xlu0 %v993
        %v1007 = vpop.xlane.xlu0 %1006
        %1008 = vadd.xlane.f32.xlu0 %v994
        %v1009 = vpop.xlane.xlu0 %1008
        %1010 = vadd.xlane.f32.xlu0 %v995
        %v1011 = vpop.xlane.xlu0 %1010
        %v1012 = vadd.f32 %v972, %v997
        %v1013 = vadd.f32 %v973, %v999
        %v1014 = vadd.f32 %v974, %v1001
        %v1015 = vadd.f32 %v975, %v1003
        %v1016 = vadd.f32 %v976, %v1005
        %v1017 = vadd.f32 %v977, %v1007
        %v1018 = vadd.f32 %v978, %v1009
        %v1019 = vadd.f32 %v979, %v1011
        %1020 = vst.msk [vmem:[#allocation5] sm:$0xff] %vm809, %v1012
        %1021 = vst.msk [vmem:[#allocation5 + $0x8] sm:$0xff] %vm809, %v1013
        %1022 = vst.msk [vmem:[#allocation5 + $0x10] sm:$0xff] %vm809, %v1014
        %1023 = vst.msk [vmem:[#allocation5 + $0x18] sm:$0xff] %vm809, %v1015
        %1024 = vst.msk [vmem:[#allocation5 + $0x20] sm:$0xff] %vm809, %v1016
        %1025 = vst.msk [vmem:[#allocation5 + $0x28] sm:$0xff] %vm809, %v1017
        %1026 = vst.msk [vmem:[#allocation5 + $0x30] sm:$0xff] %vm809, %v1018
        %1027 = vst.msk [vmem:[#allocation5 + $0x38] sm:$0xff] %vm809, %v1019
        // Predicated region
        $region41: #{tpu_custom_call.1} parent=35 // pred_check
          %p1028 = pneg %p266
        $region42: #{tpu_custom_call.1} parent=35 // pred_check_branch
          %1030 = sbr.rel (%p1028) target = $region44
        $region43: #{tpu_custom_call.1} parent=35 // pred_region
          %v1031 = vld [vmem:[#allocation2] sm:$0xff]
          %v1032 = vld [vmem:[#allocation2 + $0x8] sm:$0xff]
          %v1033 = vld [vmem:[#allocation2 + $0x10] sm:$0xff]
          %v1034 = vld [vmem:[#allocation2 + $0x18] sm:$0xff]
          %v1035 = vld [vmem:[#allocation2 + $0x20] sm:$0xff]
          %v1036 = vld [vmem:[#allocation2 + $0x28] sm:$0xff]
          %v1037 = vld [vmem:[#allocation2 + $0x30] sm:$0xff]
          %v1038 = vld [vmem:[#allocation2 + $0x38] sm:$0xff]
          %v1039 = vsub.f32 0.0, %v1031
          %v1040 = vsub.f32 0.0, %v1032
          %v1041 = vsub.f32 0.0, %v1033
          %v1042 = vsub.f32 0.0, %v1034
          %v1043 = vsub.f32 0.0, %v1035
          %v1044 = vsub.f32 0.0, %v1036
          %v1045 = vsub.f32 0.0, %v1037
          %v1046 = vsub.f32 0.0, %v1038
          %v1047 = vmul.f32 %v1039, 1.442695
          %v1048 = vpow.pop %v1047
          %v1049 = vmul.f32 %v1040, 1.442695
          %v1050 = vpow.pop %v1049
          %v1051 = vmul.f32 %v1041, 1.442695
          %v1052 = vpow.pop %v1051
          %v1053 = vmul.f32 %v1042, 1.442695
          %v1054 = vpow.pop %v1053
          %v1055 = vmul.f32 %v1043, 1.442695
          %v1056 = vpow.pop %v1055
          %v1057 = vmul.f32 %v1044, 1.442695
          %v1058 = vpow.pop %v1057
          %v1059 = vmul.f32 %v1045, 1.442695
          %v1060 = vpow.pop %v1059
          %v1061 = vmul.f32 %v1046, 1.442695
          %v1062 = vpow.pop %v1061
          %v1063 = vld [vmem:[#allocation3] sm:$0xff]
          %v1064 = vld [vmem:[#allocation3 + $0x8] sm:$0xff]
          %v1065 = vld [vmem:[#allocation3 + $0x10] sm:$0xff]
          %v1066 = vld [vmem:[#allocation3 + $0x18] sm:$0xff]
          %v1067 = vld [vmem:[#allocation3 + $0x20] sm:$0xff]
          %v1068 = vld [vmem:[#allocation3 + $0x28] sm:$0xff]
          %v1069 = vld [vmem:[#allocation3 + $0x30] sm:$0xff]
          %v1070 = vld [vmem:[#allocation3 + $0x38] sm:$0xff]
          %v1071 = vmul.f32 %v1048, %v1063
          %v1072 = vmul.f32 %v1050, %v1064
          %v1073 = vmul.f32 %v1052, %v1065
          %v1074 = vmul.f32 %v1054, %v1066
          %v1075 = vmul.f32 %v1056, %v1067
          %v1076 = vmul.f32 %v1058, %v1068
          %v1077 = vmul.f32 %v1060, %v1069
          %v1078 = vmul.f32 %v1062, %v1070
          %v1079 = vld [vmem:[#allocation4] sm:$0xff]
          %v1080 = vld [vmem:[#allocation4 + $0x8] sm:$0xff]
          %v1081 = vld [vmem:[#allocation4 + $0x10] sm:$0xff]
          %v1082 = vld [vmem:[#allocation4 + $0x18] sm:$0xff]
          %v1083 = vld [vmem:[#allocation4 + $0x20] sm:$0xff]
          %v1084 = vld [vmem:[#allocation4 + $0x28] sm:$0xff]
          %v1085 = vld [vmem:[#allocation4 + $0x30] sm:$0xff]
          %v1086 = vld [vmem:[#allocation4 + $0x38] sm:$0xff]
          %v1087 = vadd.f32 %v1071, %v1079
          %v1088 = vadd.f32 %v1072, %v1080
          %v1089 = vadd.f32 %v1073, %v1081
          %v1090 = vadd.f32 %v1074, %v1082
          %v1091 = vadd.f32 %v1075, %v1083
          %v1092 = vadd.f32 %v1076, %v1084
          %v1093 = vadd.f32 %v1077, %v1085
          %v1094 = vadd.f32 %v1078, %v1086
          %v1095 = vld [vmem:[%s249] sm:$0xff]
          %v1096 = vld [vmem:[%s249 + $0x8] sm:$0xff]
          %v1097 = vld [vmem:[%s249 + $0x10] sm:$0xff]
          %v1098 = vld [vmem:[%s249 + $0x18] sm:$0xff]
          %v1099 = vld [vmem:[%s249 + $0x20] sm:$0xff]
          %v1100 = vld [vmem:[%s249 + $0x28] sm:$0xff]
          %v1101 = vld [vmem:[%s249 + $0x30] sm:$0xff]
          %v1102 = vld [vmem:[%s249 + $0x38] sm:$0xff]
          %v1103 = vld [vmem:[#allocation5] sm:$0xff]
          %v1104 = vld [vmem:[#allocation5 + $0x8] sm:$0xff]
          %v1105 = vld [vmem:[#allocation5 + $0x10] sm:$0xff]
          %v1106 = vld [vmem:[#allocation5 + $0x18] sm:$0xff]
          %v1107 = vld [vmem:[#allocation5 + $0x20] sm:$0xff]
          %v1108 = vld [vmem:[#allocation5 + $0x28] sm:$0xff]
          %v1109 = vld [vmem:[#allocation5 + $0x30] sm:$0xff]
          %v1110 = vld [vmem:[#allocation5 + $0x38] sm:$0xff]
          %v1111 = vlog2.pop %v1087
          %v1112 = vmul.f32 %v1111, 0.6931472
          %v1113 = vlog2.pop %v1088
          %v1114 = vmul.f32 %v1113, 0.6931472
          %v1115 = vlog2.pop %v1089
          %v1116 = vmul.f32 %v1115, 0.6931472
          %v1117 = vlog2.pop %v1090
          %v1118 = vmul.f32 %v1117, 0.6931472
          %v1119 = vlog2.pop %v1091
          %v1120 = vmul.f32 %v1119, 0.6931472
          %v1121 = vlog2.pop %v1092
          %v1122 = vmul.f32 %v1121, 0.6931472
          %v1123 = vlog2.pop %v1093
          %v1124 = vmul.f32 %v1123, 0.6931472
          %v1125 = vlog2.pop %v1094
          %v1126 = vmul.f32 %v1125, 0.6931472
          %v1127 = vadd.f32 %v1031, %v1112
          %v1128 = vadd.f32 %v1032, %v1114
          %v1129 = vadd.f32 %v1033, %v1116
          %v1130 = vadd.f32 %v1034, %v1118
          %v1131 = vadd.f32 %v1035, %v1120
          %v1132 = vadd.f32 %v1036, %v1122
          %v1133 = vadd.f32 %v1037, %v1124
          %v1134 = vadd.f32 %v1038, %v1126
          %1143 = vrot.lane.b32.xlu0 %v1127, 3
          %v1144 = vpop.permute.xlu0 %1143
          %1145 = vrot.lane.b32.xlu0 %v1128, 3
          %v1146 = vpop.permute.xlu0 %1145
          %1147 = vrot.lane.b32.xlu0 %v1129, 3
          %v1148 = vpop.permute.xlu0 %1147
          %1149 = vrot.lane.b32.xlu0 %v1130, 3
          %v1150 = vpop.permute.xlu0 %1149
          %1151 = vrot.lane.b32.xlu0 %v1131, 3
          %v1152 = vpop.permute.xlu0 %1151
          %1153 = vrot.lane.b32.xlu0 %v1132, 3
          %v1154 = vpop.permute.xlu0 %1153
          %1155 = vrot.lane.b32.xlu0 %v1133, 3
          %v1156 = vpop.permute.xlu0 %1155
          %1157 = vrot.lane.b32.xlu0 %v1134, 3
          %v1158 = vpop.permute.xlu0 %1157
          %v1167 = vmul.f32 %v1095, %v1144
          %v1168 = vmul.f32 %v1096, %v1146
          %v1169 = vmul.f32 %v1097, %v1148
          %v1170 = vmul.f32 %v1098, %v1150
          %v1171 = vmul.f32 %v1099, %v1152
          %v1172 = vmul.f32 %v1100, %v1154
          %v1173 = vmul.f32 %v1101, %v1156
          %v1174 = vmul.f32 %v1102, %v1158
          %1183 = vrot.lane.b32.xlu0 %v1167, 125
          %v1184 = vpop.permute.xlu0 %1183
          %1185 = vrot.lane.b32.xlu0 %v1168, 125
          %v1186 = vpop.permute.xlu0 %1185
          %1187 = vrot.lane.b32.xlu0 %v1169, 125
          %v1188 = vpop.permute.xlu0 %1187
          %1189 = vrot.lane.b32.xlu0 %v1170, 125
          %v1190 = vpop.permute.xlu0 %1189
          %1191 = vrot.lane.b32.xlu0 %v1171, 125
          %v1192 = vpop.permute.xlu0 %1191
          %1193 = vrot.lane.b32.xlu0 %v1172, 125
          %v1194 = vpop.permute.xlu0 %1193
          %1195 = vrot.lane.b32.xlu0 %v1173, 125
          %v1196 = vpop.permute.xlu0 %1195
          %1197 = vrot.lane.b32.xlu0 %v1174, 125
          %v1198 = vpop.permute.xlu0 %1197
          %v1207 = vsub.f32 %v1103, %v1184
          %v1208 = vsub.f32 %v1104, %v1186
          %v1209 = vsub.f32 %v1105, %v1188
          %v1210 = vsub.f32 %v1106, %v1190
          %v1211 = vsub.f32 %v1107, %v1192
          %v1212 = vsub.f32 %v1108, %v1194
          %v1213 = vsub.f32 %v1109, %v1196
          %v1214 = vsub.f32 %v1110, %v1198
          %vm1215 = vcmp.lt.s32.totalorder %v513, 8
          %vm1216 = vcmp.lt.s32.totalorder %v514, 8
          %vm1217 = vcmp.lt.s32.totalorder %v515, 8
          %vm1218 = vcmp.lt.s32.totalorder %v516, 8
          %vm1219 = vcmp.lt.s32.totalorder %v517, 8
          %vm1220 = vcmp.lt.s32.totalorder %v518, 8
          %vm1221 = vcmp.lt.s32.totalorder %v519, 8
          %vm1222 = vcmp.lt.s32.totalorder %v520, 8
          %v1223 = vsel %vm1215, %v1207, 0.0
          %v1224 = vsel %vm1216, %v1208, 0.0
          %v1225 = vsel %vm1217, %v1209, 0.0
          %v1226 = vsel %vm1218, %v1210, 0.0
          %v1227 = vsel %vm1219, %v1211, 0.0
          %v1228 = vsel %vm1220, %v1212, 0.0
          %v1229 = vsel %vm1221, %v1213, 0.0
          %v1230 = vsel %vm1222, %v1214, 0.0
          %v1231 = vsel %vm809, %v1223, 0.0
          %v1232 = vsel %vm809, %v1224, 0.0
          %v1233 = vadd.f32 %v1231, %v1232
          %v1234 = vsel %vm809, %v1225, 0.0
          %v1235 = vadd.f32 %v1233, %v1234
          %v1236 = vsel %vm809, %v1226, 0.0
          %v1237 = vadd.f32 %v1235, %v1236
          %v1238 = vsel %vm809, %v1227, 0.0
          %v1239 = vadd.f32 %v1237, %v1238
          %v1240 = vsel %vm809, %v1228, 0.0
          %v1241 = vadd.f32 %v1239, %v1240
          %v1242 = vsel %vm809, %v1229, 0.0
          %v1243 = vadd.f32 %v1241, %v1242
          %v1244 = vsel %vm809, %v1230, 0.0
          %v1245 = vadd.f32 %v1243, %v1244
          %v1246 = vrot.slane %v1245, 4
          %v1247 = vadd.f32 %v1245, %v1246
          %v1248 = vrot.slane %v1247, 2
          %v1249 = vadd.f32 %v1247, %v1248
          %v1250 = vrot.slane %v1249, 1
          %v1251 = vadd.f32 %v1249, %v1250
          %vm1252 = vcmp.eq.s32.totalorder %v523, 0
          %1254 = vset.pattern.permute.xlu0 0
          %1255 = vperm.xlu0 %1254, %v1251
          %v1256 = vpop.permute.xlu0 %1255
          %v1258 = vsel %vm1252, %v1256, 0.0
          %1259 = vst [vmem:[%s244] sm:$0x1] %v1258
        $region44: #{tpu_custom_call.1} parent=35 // pred_fallthru
          _
        %s1260 = sand.u32 %s142, 1
        %s1261 = scalar_lea.sflag [#allocation7], %s1260
        %s1262 = sand.u32 %s142, 1
        %s1263 = scalar_lea.vmem [#allocation6], %s1262
        // Predicated region
        $region45: #{tpu_custom_call.1} parent=35 // pred_check
          %p1264 = pneg %p152
        $region46: #{tpu_custom_call.1} parent=35 // pred_check_branch
          %1266 = sbr.rel (%p1264) target = $region48
        $region47: #{tpu_custom_call.1} parent=35 // pred_region
          %s1268 = ssub.s32 16, 16
          %1269 = vsyncadd %s1261, %s1268
          %s1270 = smul.addr %s22, 16
          %s1271 = scalar_lea.hbm %s4, %s1270
          %s1273 = sshll.u32 %s1263, 4
          %s1274 = int_to_ptr.vmem [resolvable:$true] %s1273
          %1276 = dma.vmem_to_hbm [thread:$0]  %s1274, 16, %s1271, %s1261
        $region48: #{tpu_custom_call.1} parent=35 // pred_fallthru
          _
      $region36: #{tpu_custom_call.1} parent=5 // pred_fallthru
        _
      %p1277 = scmp.le.s32.totalorder 2, %s13
      // Predicated region
      $region49: #{tpu_custom_call.1} parent=5 // pred_check
        %p1278 = pneg %p1277
      $region50: #{tpu_custom_call.1} parent=5 // pred_check_branch
        %1280 = sbr.rel (%p1278) target = $region52
      $region51: #{tpu_custom_call.1} parent=5 // pred_region
        %s1281 = ssub.s32 %s13, 2
        // Predicated region
        $region53: #{tpu_custom_call.1} parent=51 // pred_check
          %p1282 = pneg %p158
        $region54: #{tpu_custom_call.1} parent=51 // pred_check_branch
          %1284 = sbr.rel (%p1282) target = $region56
        $region55: #{tpu_custom_call.1} parent=51 // pred_region
          %s1285 = sand.u32 %s143, 1
          %s1286 = scalar_lea.sflag [#allocation7], %s1285
          %s1287 = sand.u32 %s143, 1
          %s1288 = scalar_lea.vmem [#allocation6], %s1287
          %1289 = dma.done %s1286, 16
        $region56: #{tpu_custom_call.1} parent=51 // pred_fallthru
          _
      $region52: #{tpu_custom_call.1} parent=5 // pred_fallthru
        _
    $region6: #{tpu_custom_call.1} parent=1 // loop_footer
      %s17 = sadd.s32 1, %s13
    $region7: #{tpu_custom_call.1} parent=1 // loop_footer_branch
      %12 = sbr.rel target = $region3
    $region8: #{tpu_custom_call.1} parent=1 // loop_exit
      _
    %1290 = vsyncpa [#allocation7], 1
    %s1291 = scalar_lea.sflag [#allocation7], 1
    %1292 = vsyncpa %s1291, 1

</llo_original>
